<compile_context>
chip_gen: v5e
topology: v5e:2x2
jax: 0.10.0
libtpu: 0.0.40
codegen_flags: <defaults>
</compile_context>

<pallas_src>
import numpy as np
import jax
import jax.numpy as jnp
from jax.experimental import pallas as pl
from jax.experimental.pallas import tpu as pltpu

H_N = 20            # hidden width of the PyTorch module
INPUT_N = 3         # input features
N_LAYERS = 10       # 10 Linear layers, Swish after the first 9
H_PAD = 32          # stored weight padding (sublane dim)
H_ACT = 24          # active sublane rows carried through the layers (3 x 8)
TM_TARGET = 8192    # max batch lanes per grid step


def _use_bf16_activations():
    """bf16 swish/bias path only on chips with bf16 VPU/EUP (v6e, v7x)."""
    try:
        kind = jax.devices()[0].device_kind.lower()
    except Exception:
        return False
    return ("v6" in kind) or ("v7" in kind)


_ACT_DTYPE = jnp.bfloat16 if _use_bf16_activations() else jnp.float32


def _swish(x):
    # x * sigmoid(x) == x * 0.5 * (tanh(x/2) + 1): one EUP tanh, no divide.
    half = jnp.asarray(0.5, x.dtype)
    return x * (half * jnp.tanh(half * x) + half)


def mlp_kernel(x_ref, w_ref, b_ref, o_ref):
    """One batch tile of the 10-layer MLP.

    x_ref: (INPUT_N, TM) f32              -- inputs, batch along lanes
    w_ref: (N_LAYERS, H_PAD, H_PAD) bf16  -- weights, (out, in) layout, zero padded
    b_ref: (N_LAYERS, H_PAD, 1) f32       -- biases, feature along sublanes
    o_ref: (1, TM) f32                    -- lane-dense output row
    """
    x = x_ref[...]                                     # (3, TM) f32

    # Layer 0 (3 -> 20): three f32 VPU broadcast-MACs over the 24 active rows.
    w0 = w_ref[0][:H_ACT, :].astype(jnp.float32)       # (24, 32)
    h32 = b_ref[0][:H_ACT, :]                          # (24, 1)
    for k in range(INPUT_N):
        h32 = h32 + w0[:, k:k + 1] * x[k:k + 1, :]     # (24, TM) f32
    h = _swish(h32.astype(_ACT_DTYPE))

    # Layers 1..8 (20 -> 20): MXU matmuls, bf16 operands, f32 accumulation.
    for layer in range(1, N_LAYERS - 1):
        w = w_ref[layer][:H_ACT, :H_ACT]               # (24, 24) bf16
        y = jnp.dot(w, h.astype(jnp.bfloat16),
                    preferred_element_type=jnp.float32)
        y = y + b_ref[layer][:H_ACT, :]                # (24, 1) broadcast over lanes
        h = _swish(y.astype(_ACT_DTYPE))

    # Layer 9 (20 -> 1): only output row 0 is real; scalar bias, no swish,
    # lane-dense (1, TM) store.
    w_last = w_ref[N_LAYERS - 1][:8, :H_ACT]           # (8, 24) bf16 (rows 1..7 zero)
    y = jnp.dot(w_last, h.astype(jnp.bfloat16),
                preferred_element_type=jnp.float32)    # (8, TM) f32
    o_ref[...] = (y[0:1, :] + b_ref[N_LAYERS - 1][0:1, 0:1]).astype(o_ref.dtype)


def _pick_tiling(n):
    """Largest lane tile <= TM_TARGET giving an even (>= 2) number of blocks.

    Even block count => the single 'parallel' grid axis splits 1:1 across the
    two TensorCores on v7x; shrinking tm (instead of adding a whole padded
    block) keeps the padding waste small on single-core chips."""
    blocks = max(2, -(-n // TM_TARGET))
    if blocks % 2:
        blocks += 1
    tm = -(-n // blocks)                 # ceil(n / blocks)
    tm = -(-tm // 128) * 128             # lane multiple
    tm = max(tm, 128)
    n_pad = blocks * tm
    return tm, n_pad


@jax.jit
def pinn_u_forward(x, w_stack, b_stack):
    """x: (N, INPUT_N) float32 -> (N, 1) float32."""
    n = x.shape[0]
    tm, n_pad = _pick_tiling(n)

    # Dense transposed input (3, n_pad).  Padded batch columns are zeros; the
    # resulting garbage outputs are bounded and sliced off at the end.
    x_t = jnp.pad(x.astype(jnp.float32).T, ((0, 0), (0, n_pad - n)))

    out = pl.pallas_call(
        mlp_kernel,
        out_shape=jax.ShapeDtypeStruct((1, n_pad), jnp.float32),
        grid_spec=pltpu.PrefetchScalarGridSpec(
            num_scalar_prefetch=0,
            grid=(n_pad // tm,),
            in_specs=[
                pl.BlockSpec((INPUT_N, tm), lambda i: (0, i)),
                # Constant index maps: weights/biases (~21 KiB) stay resident
                # in VMEM across the grid; the pipeline skips re-DMA because
                # the block index never changes.
                pl.BlockSpec((N_LAYERS, H_PAD, H_PAD), lambda i: (0, 0, 0)),
                pl.BlockSpec((N_LAYERS, H_PAD, 1), lambda i: (0, 0, 0)),
            ],
            out_specs=pl.BlockSpec((1, tm), lambda i: (0, i)),
        ),
        compiler_params=pltpu.CompilerParams(
            dimension_semantics=("parallel",)),
    )(x_t, w_stack, b_stack)

    return out[0, :n].reshape(n, 1)


def init_params(key):
    """PyTorch-Linear-style U(-1/sqrt(fan_in), 1/sqrt(fan_in)) init.

    Returns stacked, zero-padded weights (N_LAYERS, H_PAD, H_PAD) in bf16
    ((out, in) layout), biases (N_LAYERS, H_PAD, 1) in f32, and the raw f32
    per-layer (W, b) list for the reference implementations."""
    dims = [INPUT_N] + [H_N] * (N_LAYERS - 1) + [1]
    w_stack = jnp.zeros((N_LAYERS, H_PAD, H_PAD), jnp.float32)
    b_stack = jnp.zeros((N_LAYERS, H_PAD, 1), jnp.float32)
    raw = []
    for layer in range(N_LAYERS):
        fan_in, fan_out = dims[layer], dims[layer + 1]
        key, kw, kb = jax.random.split(key, 3)
        bound = 1.0 / float(np.sqrt(fan_in))
        w = jax.random.uniform(kw, (fan_out, fan_in), jnp.float32, -bound, bound)
        b = jax.random.uniform(kb, (fan_out,), jnp.float32, -bound, bound)
        raw.append((w, b))
        w_stack = w_stack.at[layer, :fan_out, :fan_in].set(w)   # native (out, in)
        b_stack = b_stack.at[layer, :fan_out, 0].set(b)
    return w_stack.astype(jnp.bfloat16), b_stack, raw


def reference_forward_mirrored(x, raw_params):
    """Plain-JAX forward mirroring the kernel's precision path (bf16 MXU
    operands, f32 accumulation, f32 layer 0 with bf16-rounded weights, and the
    same activation dtype as the kernel)."""
    act_dt = _ACT_DTYPE
    h = x.astype(jnp.float32)
    for layer, (w, b) in enumerate(raw_params):
        w_bf = w.astype(jnp.bfloat16)
        if layer == 0:
            w0 = w_bf.astype(jnp.float32)
            z = jnp.sum(h[:, None, :] * w0[None, :, :], axis=-1) + b
        else:
            z = jax.lax.dot_general(
                h.astype(jnp.bfloat16), w_bf,
                dimension_numbers=(((1,), (1,)), ((), ())),
                preferred_element_type=jnp.float32) + b
        if layer < N_LAYERS - 1:
            h = _swish(z.astype(act_dt))
        else:
            h = z
    return h


def reference_forward_f64(x_np, raw_params):
    """Exact float64 NumPy forward of the original PyTorch module."""
    h = np.asarray(x_np, np.float64)
    for layer, (w, b) in enumerate(raw_params):
        w64 = np.asarray(w, np.float64)
        b64 = np.asarray(b, np.float64)
        h = h @ w64.T + b64
        if layer < N_LAYERS - 1:
            h = h / (1.0 + np.exp(-h))       # swish(x) = x * sigmoid(x)
    return h


if __name__ == "__main__":
    key = jax.random.PRNGKey(0)
    key, kx = jax.random.split(key)

    n_points = 777   # small demo size (module default is 10000); exercises padding
    lb = jnp.array([-7.5, 0.0, -7.5], jnp.float32)
    ub = jnp.array([15.0, 7.7, 7.5], jnp.float32)
    x = lb + (ub - lb) * jax.random.uniform(kx, (n_points, INPUT_N), jnp.float32)

    w_stack, b_stack, raw = init_params(key)

    out = jax.block_until_ready(pinn_u_forward(x, w_stack, b_stack))
    assert out.shape == (n_points, 1)

    # (1) Kernel vs a JAX reference using the same mixed-precision path.
    ref_mirror = reference_forward_mirrored(x, raw)
    err_mirror = float(jnp.max(jnp.abs(out - ref_mirror.astype(jnp.float32))))
    assert jnp.allclose(out, ref_mirror.astype(jnp.float32),
                        atol=3e-2, rtol=3e-2), err_mirror

    # (2) Sanity check vs exact float64 math of the original module
    #     (loose bound: bf16 drift is ~1e-2; a wiring bug would be O(1)).
    ref64 = reference_forward_f64(np.asarray(x, np.float64), raw)
    max_err = float(np.max(np.abs(np.asarray(out, np.float64) - ref64)))
    assert max_err < 0.25, max_err

    print("KERNEL_OK")
</pallas_src>

<mosaic_0001>
module attributes {stable_mosaic.version = 11 : i64} {
  func.func @mlp_kernel(%arg0: i32, %arg1: memref<3x512xf32, #tpu.memory_space<vmem>>, %arg2: memref<10x32x32xbf16, #tpu.memory_space<vmem>>, %arg3: memref<10x32x1xf32, #tpu.memory_space<vmem>>, %arg4: memref<1x512xf32, #tpu.memory_space<vmem>>) attributes {dimension_semantics = [#tpu.dimension_semantics<parallel>], iteration_bounds = array<i64: 2>, scalar_prefetch = 0 : i64, scratch_operands = 0 : i64, tpu.core_type = #tpu.core_type<tc>, window_params = [{transform_indices = @transform_0, window_bounds = array<i64: 3, 512>}, {pipeline_mode = #tpu.pipeline_mode<synchronous>, transform_indices = @transform_1, window_bounds = array<i64: 10, 32, 32>}, {pipeline_mode = #tpu.pipeline_mode<synchronous>, transform_indices = @transform_2, window_bounds = array<i64: 10, 32, 1>}, {transform_indices = @transform_3, window_bounds = array<i64: 1, 512>}]} {
    %c0 = arith.constant 0 : index
    %c0_0 = arith.constant 0 : index
    %0 = vector.load %arg1[%c0, %c0_0] : memref<3x512xf32, #tpu.memory_space<vmem>>, vector<3x512xf32>
    %c0_1 = arith.constant 0 : index
    %c0_2 = arith.constant 0 : index
    %c0_3 = arith.constant 0 : index
    %1 = vector.load %arg2[%c0_1, %c0_2, %c0_3] : memref<10x32x32xbf16, #tpu.memory_space<vmem>>, vector<1x32x32xbf16>
    %2 = vector.shape_cast %1 : vector<1x32x32xbf16> to vector<32x32xbf16>
    %3 = vector.extract_strided_slice %2 {offsets = [0, 0], sizes = [24, 32], strides = [1, 1]} : vector<32x32xbf16> to vector<24x32xbf16>
    %4 = arith.extf %3 : vector<24x32xbf16> to vector<24x32xf32>
    %c0_4 = arith.constant 0 : index
    %c0_5 = arith.constant 0 : index
    %c0_6 = arith.constant 0 : index
    %5 = vector.load %arg3[%c0_4, %c0_5, %c0_6] : memref<10x32x1xf32, #tpu.memory_space<vmem>>, vector<1x32x1xf32>
    %6 = vector.shape_cast %5 : vector<1x32x1xf32> to vector<32x1xf32>
    %7 = vector.extract_strided_slice %6 {offsets = [0, 0], sizes = [24, 1], strides = [1, 1]} : vector<32x1xf32> to vector<24x1xf32>
    %8 = vector.extract_strided_slice %4 {offsets = [0, 0], sizes = [24, 1], strides = [1, 1]} : vector<24x32xf32> to vector<24x1xf32>
    %9 = vector.extract_strided_slice %0 {offsets = [0, 0], sizes = [1, 512], strides = [1, 1]} : vector<3x512xf32> to vector<1x512xf32>
    %10 = vector.broadcast %8 : vector<24x1xf32> to vector<24x512xf32>
    %11 = vector.broadcast %9 : vector<1x512xf32> to vector<24x512xf32>
    %12 = arith.mulf %10, %11 : vector<24x512xf32>
    %13 = vector.broadcast %7 : vector<24x1xf32> to vector<24x512xf32>
    %14 = arith.addf %13, %12 : vector<24x512xf32>
    %15 = vector.extract_strided_slice %4 {offsets = [0, 1], sizes = [24, 1], strides = [1, 1]} : vector<24x32xf32> to vector<24x1xf32>
    %16 = vector.extract_strided_slice %0 {offsets = [1, 0], sizes = [1, 512], strides = [1, 1]} : vector<3x512xf32> to vector<1x512xf32>
    %17 = vector.broadcast %15 : vector<24x1xf32> to vector<24x512xf32>
    %18 = vector.broadcast %16 : vector<1x512xf32> to vector<24x512xf32>
    %19 = arith.mulf %17, %18 : vector<24x512xf32>
    %20 = arith.addf %14, %19 : vector<24x512xf32>
    %21 = vector.extract_strided_slice %4 {offsets = [0, 2], sizes = [24, 1], strides = [1, 1]} : vector<24x32xf32> to vector<24x1xf32>
    %22 = vector.extract_strided_slice %0 {offsets = [2, 0], sizes = [1, 512], strides = [1, 1]} : vector<3x512xf32> to vector<1x512xf32>
    %23 = vector.broadcast %21 : vector<24x1xf32> to vector<24x512xf32>
    %24 = vector.broadcast %22 : vector<1x512xf32> to vector<24x512xf32>
    %25 = arith.mulf %23, %24 : vector<24x512xf32>
    %26 = arith.addf %20, %25 : vector<24x512xf32>
    %cst = arith.constant 5.000000e-01 : f32
    %27 = vector.broadcast %cst : f32 to vector<24x512xf32>
    %28 = arith.mulf %27, %26 : vector<24x512xf32>
    %29 = math.tanh %28 : vector<24x512xf32>
    %cst_7 = arith.constant 5.000000e-01 : f32
    %30 = vector.broadcast %cst_7 : f32 to vector<24x512xf32>
    %31 = arith.mulf %30, %29 : vector<24x512xf32>
    %cst_8 = arith.constant 5.000000e-01 : f32
    %32 = vector.broadcast %cst_8 : f32 to vector<24x512xf32>
    %33 = arith.addf %31, %32 : vector<24x512xf32>
    %34 = arith.mulf %26, %33 : vector<24x512xf32>
    %c1 = arith.constant 1 : index
    %c0_9 = arith.constant 0 : index
    %c0_10 = arith.constant 0 : index
    %35 = vector.load %arg2[%c1, %c0_9, %c0_10] : memref<10x32x32xbf16, #tpu.memory_space<vmem>>, vector<1x32x32xbf16>
    %36 = vector.shape_cast %35 : vector<1x32x32xbf16> to vector<32x32xbf16>
    %37 = vector.extract_strided_slice %36 {offsets = [0, 0], sizes = [24, 24], strides = [1, 1]} : vector<32x32xbf16> to vector<24x24xbf16>
    %38 = arith.truncf %34 : vector<24x512xf32> to vector<24x512xbf16>
    %cst_11 = arith.constant dense<0.000000e+00> : vector<24x512xf32>
    %39 = tpu.matmul %37, %38, %cst_11 {dimension_numbers = #tpu.dot_dimension_numbers<[1], [0], [0], [1], [0, 0, 1, 1], [], []>} : vector<24x24xbf16>, vector<24x512xbf16>, vector<24x512xf32> -> vector<24x512xf32>
    %c1_12 = arith.constant 1 : index
    %c0_13 = arith.constant 0 : index
    %c0_14 = arith.constant 0 : index
    %40 = vector.load %arg3[%c1_12, %c0_13, %c0_14] : memref<10x32x1xf32, #tpu.memory_space<vmem>>, vector<1x32x1xf32>
    %41 = vector.shape_cast %40 : vector<1x32x1xf32> to vector<32x1xf32>
    %42 = vector.extract_strided_slice %41 {offsets = [0, 0], sizes = [24, 1], strides = [1, 1]} : vector<32x1xf32> to vector<24x1xf32>
    %43 = vector.broadcast %42 : vector<24x1xf32> to vector<24x512xf32>
    %44 = arith.addf %39, %43 : vector<24x512xf32>
    %cst_15 = arith.constant 5.000000e-01 : f32
    %45 = vector.broadcast %cst_15 : f32 to vector<24x512xf32>
    %46 = arith.mulf %45, %44 : vector<24x512xf32>
    %47 = math.tanh %46 : vector<24x512xf32>
    %cst_16 = arith.constant 5.000000e-01 : f32
    %48 = vector.broadcast %cst_16 : f32 to vector<24x512xf32>
    %49 = arith.mulf %48, %47 : vector<24x512xf32>
    %cst_17 = arith.constant 5.000000e-01 : f32
    %50 = vector.broadcast %cst_17 : f32 to vector<24x512xf32>
    %51 = arith.addf %49, %50 : vector<24x512xf32>
    %52 = arith.mulf %44, %51 : vector<24x512xf32>
    %c2 = arith.constant 2 : index
    %c0_18 = arith.constant 0 : index
    %c0_19 = arith.constant 0 : index
    %53 = vector.load %arg2[%c2, %c0_18, %c0_19] : memref<10x32x32xbf16, #tpu.memory_space<vmem>>, vector<1x32x32xbf16>
    %54 = vector.shape_cast %53 : vector<1x32x32xbf16> to vector<32x32xbf16>
    %55 = vector.extract_strided_slice %54 {offsets = [0, 0], sizes = [24, 24], strides = [1, 1]} : vector<32x32xbf16> to vector<24x24xbf16>
    %56 = arith.truncf %52 : vector<24x512xf32> to vector<24x512xbf16>
    %cst_20 = arith.constant dense<0.000000e+00> : vector<24x512xf32>
    %57 = tpu.matmul %55, %56, %cst_20 {dimension_numbers = #tpu.dot_dimension_numbers<[1], [0], [0], [1], [0, 0, 1, 1], [], []>} : vector<24x24xbf16>, vector<24x512xbf16>, vector<24x512xf32> -> vector<24x512xf32>
    %c2_21 = arith.constant 2 : index
    %c0_22 = arith.constant 0 : index
    %c0_23 = arith.constant 0 : index
    %58 = vector.load %arg3[%c2_21, %c0_22, %c0_23] : memref<10x32x1xf32, #tpu.memory_space<vmem>>, vector<1x32x1xf32>
    %59 = vector.shape_cast %58 : vector<1x32x1xf32> to vector<32x1xf32>
    %60 = vector.extract_strided_slice %59 {offsets = [0, 0], sizes = [24, 1], strides = [1, 1]} : vector<32x1xf32> to vector<24x1xf32>
    %61 = vector.broadcast %60 : vector<24x1xf32> to vector<24x512xf32>
    %62 = arith.addf %57, %61 : vector<24x512xf32>
    %cst_24 = arith.constant 5.000000e-01 : f32
    %63 = vector.broadcast %cst_24 : f32 to vector<24x512xf32>
    %64 = arith.mulf %63, %62 : vector<24x512xf32>
    %65 = math.tanh %64 : vector<24x512xf32>
    %cst_25 = arith.constant 5.000000e-01 : f32
    %66 = vector.broadcast %cst_25 : f32 to vector<24x512xf32>
    %67 = arith.mulf %66, %65 : vector<24x512xf32>
    %cst_26 = arith.constant 5.000000e-01 : f32
    %68 = vector.broadcast %cst_26 : f32 to vector<24x512xf32>
    %69 = arith.addf %67, %68 : vector<24x512xf32>
    %70 = arith.mulf %62, %69 : vector<24x512xf32>
    %c3 = arith.constant 3 : index
    %c0_27 = arith.constant 0 : index
    %c0_28 = arith.constant 0 : index
    %71 = vector.load %arg2[%c3, %c0_27, %c0_28] : memref<10x32x32xbf16, #tpu.memory_space<vmem>>, vector<1x32x32xbf16>
    %72 = vector.shape_cast %71 : vector<1x32x32xbf16> to vector<32x32xbf16>
    %73 = vector.extract_strided_slice %72 {offsets = [0, 0], sizes = [24, 24], strides = [1, 1]} : vector<32x32xbf16> to vector<24x24xbf16>
    %74 = arith.truncf %70 : vector<24x512xf32> to vector<24x512xbf16>
    %cst_29 = arith.constant dense<0.000000e+00> : vector<24x512xf32>
    %75 = tpu.matmul %73, %74, %cst_29 {dimension_numbers = #tpu.dot_dimension_numbers<[1], [0], [0], [1], [0, 0, 1, 1], [], []>} : vector<24x24xbf16>, vector<24x512xbf16>, vector<24x512xf32> -> vector<24x512xf32>
    %c3_30 = arith.constant 3 : index
    %c0_31 = arith.constant 0 : index
    %c0_32 = arith.constant 0 : index
    %76 = vector.load %arg3[%c3_30, %c0_31, %c0_32] : memref<10x32x1xf32, #tpu.memory_space<vmem>>, vector<1x32x1xf32>
    %77 = vector.shape_cast %76 : vector<1x32x1xf32> to vector<32x1xf32>
    %78 = vector.extract_strided_slice %77 {offsets = [0, 0], sizes = [24, 1], strides = [1, 1]} : vector<32x1xf32> to vector<24x1xf32>
    %79 = vector.broadcast %78 : vector<24x1xf32> to vector<24x512xf32>
    %80 = arith.addf %75, %79 : vector<24x512xf32>
    %cst_33 = arith.constant 5.000000e-01 : f32
    %81 = vector.broadcast %cst_33 : f32 to vector<24x512xf32>
    %82 = arith.mulf %81, %80 : vector<24x512xf32>
    %83 = math.tanh %82 : vector<24x512xf32>
    %cst_34 = arith.constant 5.000000e-01 : f32
    %84 = vector.broadcast %cst_34 : f32 to vector<24x512xf32>
    %85 = arith.mulf %84, %83 : vector<24x512xf32>
    %cst_35 = arith.constant 5.000000e-01 : f32
    %86 = vector.broadcast %cst_35 : f32 to vector<24x512xf32>
    %87 = arith.addf %85, %86 : vector<24x512xf32>
    %88 = arith.mulf %80, %87 : vector<24x512xf32>
    %c4 = arith.constant 4 : index
    %c0_36 = arith.constant 0 : index
    %c0_37 = arith.constant 0 : index
    %89 = vector.load %arg2[%c4, %c0_36, %c0_37] : memref<10x32x32xbf16, #tpu.memory_space<vmem>>, vector<1x32x32xbf16>
    %90 = vector.shape_cast %89 : vector<1x32x32xbf16> to vector<32x32xbf16>
    %91 = vector.extract_strided_slice %90 {offsets = [0, 0], sizes = [24, 24], strides = [1, 1]} : vector<32x32xbf16> to vector<24x24xbf16>
    %92 = arith.truncf %88 : vector<24x512xf32> to vector<24x512xbf16>
    %cst_38 = arith.constant dense<0.000000e+00> : vector<24x512xf32>
    %93 = tpu.matmul %91, %92, %cst_38 {dimension_numbers = #tpu.dot_dimension_numbers<[1], [0], [0], [1], [0, 0, 1, 1], [], []>} : vector<24x24xbf16>, vector<24x512xbf16>, vector<24x512xf32> -> vector<24x512xf32>
    %c4_39 = arith.constant 4 : index
    %c0_40 = arith.constant 0 : index
    %c0_41 = arith.constant 0 : index
    %94 = vector.load %arg3[%c4_39, %c0_40, %c0_41] : memref<10x32x1xf32, #tpu.memory_space<vmem>>, vector<1x32x1xf32>
    %95 = vector.shape_cast %94 : vector<1x32x1xf32> to vector<32x1xf32>
    %96 = vector.extract_strided_slice %95 {offsets = [0, 0], sizes = [24, 1], strides = [1, 1]} : vector<32x1xf32> to vector<24x1xf32>
    %97 = vector.broadcast %96 : vector<24x1xf32> to vector<24x512xf32>
    %98 = arith.addf %93, %97 : vector<24x512xf32>
    %cst_42 = arith.constant 5.000000e-01 : f32
    %99 = vector.broadcast %cst_42 : f32 to vector<24x512xf32>
    %100 = arith.mulf %99, %98 : vector<24x512xf32>
    %101 = math.tanh %100 : vector<24x512xf32>
    %cst_43 = arith.constant 5.000000e-01 : f32
    %102 = vector.broadcast %cst_43 : f32 to vector<24x512xf32>
    %103 = arith.mulf %102, %101 : vector<24x512xf32>
    %cst_44 = arith.constant 5.000000e-01 : f32
    %104 = vector.broadcast %cst_44 : f32 to vector<24x512xf32>
    %105 = arith.addf %103, %104 : vector<24x512xf32>
    %106 = arith.mulf %98, %105 : vector<24x512xf32>
    %c5 = arith.constant 5 : index
    %c0_45 = arith.constant 0 : index
    %c0_46 = arith.constant 0 : index
    %107 = vector.load %arg2[%c5, %c0_45, %c0_46] : memref<10x32x32xbf16, #tpu.memory_space<vmem>>, vector<1x32x32xbf16>
    %108 = vector.shape_cast %107 : vector<1x32x32xbf16> to vector<32x32xbf16>
    %109 = vector.extract_strided_slice %108 {offsets = [0, 0], sizes = [24, 24], strides = [1, 1]} : vector<32x32xbf16> to vector<24x24xbf16>
    %110 = arith.truncf %106 : vector<24x512xf32> to vector<24x512xbf16>
    %cst_47 = arith.constant dense<0.000000e+00> : vector<24x512xf32>
    %111 = tpu.matmul %109, %110, %cst_47 {dimension_numbers = #tpu.dot_dimension_numbers<[1], [0], [0], [1], [0, 0, 1, 1], [], []>} : vector<24x24xbf16>, vector<24x512xbf16>, vector<24x512xf32> -> vector<24x512xf32>
    %c5_48 = arith.constant 5 : index
    %c0_49 = arith.constant 0 : index
    %c0_50 = arith.constant 0 : index
    %112 = vector.load %arg3[%c5_48, %c0_49, %c0_50] : memref<10x32x1xf32, #tpu.memory_space<vmem>>, vector<1x32x1xf32>
    %113 = vector.shape_cast %112 : vector<1x32x1xf32> to vector<32x1xf32>
    %114 = vector.extract_strided_slice %113 {offsets = [0, 0], sizes = [24, 1], strides = [1, 1]} : vector<32x1xf32> to vector<24x1xf32>
    %115 = vector.broadcast %114 : vector<24x1xf32> to vector<24x512xf32>
    %116 = arith.addf %111, %115 : vector<24x512xf32>
    %cst_51 = arith.constant 5.000000e-01 : f32
    %117 = vector.broadcast %cst_51 : f32 to vector<24x512xf32>
    %118 = arith.mulf %117, %116 : vector<24x512xf32>
    %119 = math.tanh %118 : vector<24x512xf32>
    %cst_52 = arith.constant 5.000000e-01 : f32
    %120 = vector.broadcast %cst_52 : f32 to vector<24x512xf32>
    %121 = arith.mulf %120, %119 : vector<24x512xf32>
    %cst_53 = arith.constant 5.000000e-01 : f32
    %122 = vector.broadcast %cst_53 : f32 to vector<24x512xf32>
    %123 = arith.addf %121, %122 : vector<24x512xf32>
    %124 = arith.mulf %116, %123 : vector<24x512xf32>
    %c6 = arith.constant 6 : index
    %c0_54 = arith.constant 0 : index
    %c0_55 = arith.constant 0 : index
    %125 = vector.load %arg2[%c6, %c0_54, %c0_55] : memref<10x32x32xbf16, #tpu.memory_space<vmem>>, vector<1x32x32xbf16>
    %126 = vector.shape_cast %125 : vector<1x32x32xbf16> to vector<32x32xbf16>
    %127 = vector.extract_strided_slice %126 {offsets = [0, 0], sizes = [24, 24], strides = [1, 1]} : vector<32x32xbf16> to vector<24x24xbf16>
    %128 = arith.truncf %124 : vector<24x512xf32> to vector<24x512xbf16>
    %cst_56 = arith.constant dense<0.000000e+00> : vector<24x512xf32>
    %129 = tpu.matmul %127, %128, %cst_56 {dimension_numbers = #tpu.dot_dimension_numbers<[1], [0], [0], [1], [0, 0, 1, 1], [], []>} : vector<24x24xbf16>, vector<24x512xbf16>, vector<24x512xf32> -> vector<24x512xf32>
    %c6_57 = arith.constant 6 : index
    %c0_58 = arith.constant 0 : index
    %c0_59 = arith.constant 0 : index
    %130 = vector.load %arg3[%c6_57, %c0_58, %c0_59] : memref<10x32x1xf32, #tpu.memory_space<vmem>>, vector<1x32x1xf32>
    %131 = vector.shape_cast %130 : vector<1x32x1xf32> to vector<32x1xf32>
    %132 = vector.extract_strided_slice %131 {offsets = [0, 0], sizes = [24, 1], strides = [1, 1]} : vector<32x1xf32> to vector<24x1xf32>
    %133 = vector.broadcast %132 : vector<24x1xf32> to vector<24x512xf32>
    %134 = arith.addf %129, %133 : vector<24x512xf32>
    %cst_60 = arith.constant 5.000000e-01 : f32
    %135 = vector.broadcast %cst_60 : f32 to vector<24x512xf32>
    %136 = arith.mulf %135, %134 : vector<24x512xf32>
    %137 = math.tanh %136 : vector<24x512xf32>
    %cst_61 = arith.constant 5.000000e-01 : f32
    %138 = vector.broadcast %cst_61 : f32 to vector<24x512xf32>
    %139 = arith.mulf %138, %137 : vector<24x512xf32>
    %cst_62 = arith.constant 5.000000e-01 : f32
    %140 = vector.broadcast %cst_62 : f32 to vector<24x512xf32>
    %141 = arith.addf %139, %140 : vector<24x512xf32>
    %142 = arith.mulf %134, %141 : vector<24x512xf32>
    %c7 = arith.constant 7 : index
    %c0_63 = arith.constant 0 : index
    %c0_64 = arith.constant 0 : index
    %143 = vector.load %arg2[%c7, %c0_63, %c0_64] : memref<10x32x32xbf16, #tpu.memory_space<vmem>>, vector<1x32x32xbf16>
    %144 = vector.shape_cast %143 : vector<1x32x32xbf16> to vector<32x32xbf16>
    %145 = vector.extract_strided_slice %144 {offsets = [0, 0], sizes = [24, 24], strides = [1, 1]} : vector<32x32xbf16> to vector<24x24xbf16>
    %146 = arith.truncf %142 : vector<24x512xf32> to vector<24x512xbf16>
    %cst_65 = arith.constant dense<0.000000e+00> : vector<24x512xf32>
    %147 = tpu.matmul %145, %146, %cst_65 {dimension_numbers = #tpu.dot_dimension_numbers<[1], [0], [0], [1], [0, 0, 1, 1], [], []>} : vector<24x24xbf16>, vector<24x512xbf16>, vector<24x512xf32> -> vector<24x512xf32>
    %c7_66 = arith.constant 7 : index
    %c0_67 = arith.constant 0 : index
    %c0_68 = arith.constant 0 : index
    %148 = vector.load %arg3[%c7_66, %c0_67, %c0_68] : memref<10x32x1xf32, #tpu.memory_space<vmem>>, vector<1x32x1xf32>
    %149 = vector.shape_cast %148 : vector<1x32x1xf32> to vector<32x1xf32>
    %150 = vector.extract_strided_slice %149 {offsets = [0, 0], sizes = [24, 1], strides = [1, 1]} : vector<32x1xf32> to vector<24x1xf32>
    %151 = vector.broadcast %150 : vector<24x1xf32> to vector<24x512xf32>
    %152 = arith.addf %147, %151 : vector<24x512xf32>
    %cst_69 = arith.constant 5.000000e-01 : f32
    %153 = vector.broadcast %cst_69 : f32 to vector<24x512xf32>
    %154 = arith.mulf %153, %152 : vector<24x512xf32>
    %155 = math.tanh %154 : vector<24x512xf32>
    %cst_70 = arith.constant 5.000000e-01 : f32
    %156 = vector.broadcast %cst_70 : f32 to vector<24x512xf32>
    %157 = arith.mulf %156, %155 : vector<24x512xf32>
    %cst_71 = arith.constant 5.000000e-01 : f32
    %158 = vector.broadcast %cst_71 : f32 to vector<24x512xf32>
    %159 = arith.addf %157, %158 : vector<24x512xf32>
    %160 = arith.mulf %152, %159 : vector<24x512xf32>
    %c8 = arith.constant 8 : index
    %c0_72 = arith.constant 0 : index
    %c0_73 = arith.constant 0 : index
    %161 = vector.load %arg2[%c8, %c0_72, %c0_73] : memref<10x32x32xbf16, #tpu.memory_space<vmem>>, vector<1x32x32xbf16>
    %162 = vector.shape_cast %161 : vector<1x32x32xbf16> to vector<32x32xbf16>
    %163 = vector.extract_strided_slice %162 {offsets = [0, 0], sizes = [24, 24], strides = [1, 1]} : vector<32x32xbf16> to vector<24x24xbf16>
    %164 = arith.truncf %160 : vector<24x512xf32> to vector<24x512xbf16>
    %cst_74 = arith.constant dense<0.000000e+00> : vector<24x512xf32>
    %165 = tpu.matmul %163, %164, %cst_74 {dimension_numbers = #tpu.dot_dimension_numbers<[1], [0], [0], [1], [0, 0, 1, 1], [], []>} : vector<24x24xbf16>, vector<24x512xbf16>, vector<24x512xf32> -> vector<24x512xf32>
    %c8_75 = arith.constant 8 : index
    %c0_76 = arith.constant 0 : index
    %c0_77 = arith.constant 0 : index
    %166 = vector.load %arg3[%c8_75, %c0_76, %c0_77] : memref<10x32x1xf32, #tpu.memory_space<vmem>>, vector<1x32x1xf32>
    %167 = vector.shape_cast %166 : vector<1x32x1xf32> to vector<32x1xf32>
    %168 = vector.extract_strided_slice %167 {offsets = [0, 0], sizes = [24, 1], strides = [1, 1]} : vector<32x1xf32> to vector<24x1xf32>
    %169 = vector.broadcast %168 : vector<24x1xf32> to vector<24x512xf32>
    %170 = arith.addf %165, %169 : vector<24x512xf32>
    %cst_78 = arith.constant 5.000000e-01 : f32
    %171 = vector.broadcast %cst_78 : f32 to vector<24x512xf32>
    %172 = arith.mulf %171, %170 : vector<24x512xf32>
    %173 = math.tanh %172 : vector<24x512xf32>
    %cst_79 = arith.constant 5.000000e-01 : f32
    %174 = vector.broadcast %cst_79 : f32 to vector<24x512xf32>
    %175 = arith.mulf %174, %173 : vector<24x512xf32>
    %cst_80 = arith.constant 5.000000e-01 : f32
    %176 = vector.broadcast %cst_80 : f32 to vector<24x512xf32>
    %177 = arith.addf %175, %176 : vector<24x512xf32>
    %178 = arith.mulf %170, %177 : vector<24x512xf32>
    %c9 = arith.constant 9 : index
    %c0_81 = arith.constant 0 : index
    %c0_82 = arith.constant 0 : index
    %179 = vector.load %arg2[%c9, %c0_81, %c0_82] : memref<10x32x32xbf16, #tpu.memory_space<vmem>>, vector<1x32x32xbf16>
    %180 = vector.shape_cast %179 : vector<1x32x32xbf16> to vector<32x32xbf16>
    %181 = vector.extract_strided_slice %180 {offsets = [0, 0], sizes = [8, 24], strides = [1, 1]} : vector<32x32xbf16> to vector<8x24xbf16>
    %182 = arith.truncf %178 : vector<24x512xf32> to vector<24x512xbf16>
    %cst_83 = arith.constant dense<0.000000e+00> : vector<8x512xf32>
    %183 = tpu.matmul %181, %182, %cst_83 {dimension_numbers = #tpu.dot_dimension_numbers<[1], [0], [0], [1], [0, 0, 1, 1], [], []>} : vector<8x24xbf16>, vector<24x512xbf16>, vector<8x512xf32> -> vector<8x512xf32>
    %184 = vector.extract_strided_slice %183 {offsets = [0, 0], sizes = [1, 512], strides = [1, 1]} : vector<8x512xf32> to vector<1x512xf32>
    %c9_84 = arith.constant 9 : index
    %c0_85 = arith.constant 0 : index
    %c0_86 = arith.constant 0 : index
    %185 = vector.load %arg3[%c9_84, %c0_85, %c0_86] : memref<10x32x1xf32, #tpu.memory_space<vmem>>, vector<1x32x1xf32>
    %186 = vector.shape_cast %185 : vector<1x32x1xf32> to vector<32x1xf32>
    %187 = vector.extract_strided_slice %186 {offsets = [0, 0], sizes = [1, 1], strides = [1, 1]} : vector<32x1xf32> to vector<1x1xf32>
    %188 = vector.broadcast %187 : vector<1x1xf32> to vector<1x512xf32>
    %189 = arith.addf %184, %188 : vector<1x512xf32>
    %c0_87 = arith.constant 0 : index
    %c0_88 = arith.constant 0 : index
    %190 = vector.load %arg4[%c0_87, %c0_88] : memref<1x512xf32, #tpu.memory_space<vmem>>, vector<1x512xf32>
    tpu.vector_store %arg4[%c0_87, %c0_88], %189 {strides = array<i32>} : memref<1x512xf32, #tpu.memory_space<vmem>>, vector<1x512xf32>,
    return
  }
  func.func @transform_0(%arg0: i32) -> (i32, i32) {
    %c0_i32 = arith.constant 0 : i32
    %c0_i32_0 = arith.constant 0 : i32
    return %c0_i32, %arg0 : i32, i32
  }
  func.func @transform_1(%arg0: i32) -> (i32, i32, i32) {
    %c0_i32 = arith.constant 0 : i32
    %c0_i32_0 = arith.constant 0 : i32
    %c0_i32_1 = arith.constant 0 : i32
    %c0_i32_2 = arith.constant 0 : i32
    return %c0_i32, %c0_i32_0, %c0_i32_1 : i32, i32, i32
  }
  func.func @transform_2(%arg0: i32) -> (i32, i32, i32) {
    %c0_i32 = arith.constant 0 : i32
    %c0_i32_0 = arith.constant 0 : i32
    %c0_i32_1 = arith.constant 0 : i32
    %c0_i32_2 = arith.constant 0 : i32
    return %c0_i32, %c0_i32_0, %c0_i32_1 : i32, i32, i32
  }
  func.func @transform_3(%arg0: i32) -> (i32, i32) {
    %c0_i32 = arith.constant 0 : i32
    %c0_i32_0 = arith.constant 0 : i32
    return %c0_i32, %arg0 : i32, i32
  }
}

</mosaic_0001>

<llo_original>
// kernel: pinn_u_forward.1
$region0: #{pinn_u_forward.1}
  #allocation0 [shape = 'u32[]', space=smem, size = 0x4, offset = 0x4, fixed_abs, tag = 'smem constant byte address 0x4 - core index']
  #allocation1 [shape = 'u32[72,128]{1,0:T(1,128)}', space=vmem, size = 0x9000, scoped, tag = 'internal scratch']
  %s0 = inlined_call_operand.vmem [shape: f32[3,1024], index: 0, kind: input, shape index: {}]
  %s1 = inlined_call_operand.vmem [shape: bf16[10,32,32], index: 1, kind: input, shape index: {}]
  %s2 = inlined_call_operand.vmem [shape: f32[10,32,1], index: 2, kind: input, shape index: {}]
  %s3 = inlined_call_operand.vmem [shape: f32[1,1024], index: 3, kind: output, shape index: {}]
  %s4 = sld [smem:[#allocation0]]
  $region45: #{pinn_u_forward.1} parent=0
    _
  %s6 = ssub.s32 1, %s4
  %s7 = scalar_select 0, %s6, %s4
  loop: start=0, step=1, limit=4
  $region2: #{pinn_u_forward.1} parent=0 // loop_pre_header
    _
  $region3: #{pinn_u_forward.1} parent=0 // loop_header
    %s9 = sphi 0, %s13
    %p10 = scmp.ge.s32.totalorder %s9, 4
    %s19 = sphi 0, %s21
    %s22 = sphi 0, %s19
    %s23 = sphi 0, %s22
    %s39 = sphi 0, %s23
    %s43 = sphi 0, %s43
    %s45 = sphi 0, %s43
    %s46 = sphi 0, %s45
    %s60 = sphi 0, %s46
    %s64 = sphi 0, %s64
    %s66 = sphi 0, %s64
    %s67 = sphi 0, %s66
    %s81 = sphi 0, %s67
    %s87 = sphi 0, %s89
    %s90 = sphi 0, %s87
    %s91 = sphi 0, %s90
    %s107 = sphi 0, %s91
  $region4: #{pinn_u_forward.1} parent=0 // loop_header_branch
    %12 = sbr.rel (%p10) target = $region8
  $region5: #{pinn_u_forward.1} parent=0 // loop_body
    %s14 = ssub.s32 %s9, 1
    %s15 = ssub.s32 %s9, 2
    %s16 = sadd.s32 %s9, 1
    %s17 = ssub.s32 %s9, %s16
    %p18 = scmp.eq.s32.totalorder %s17, 0
    %s20 = sadd.s32 %s19, 1
    %s21 = scalar_select %p18, %s19, %s20
    %p24 = pneg %p18
    %p25 = scmp.eq.s32.totalorder %s9, 1
    %p26 = por %p24, %p25
    %p27 = scmp.ne.s32.totalorder %s19, %s22
    %p28 = scmp.eq.s32.totalorder %s9, 0
    %p29 = por %p27, %p28
    %p30 = scmp.ne.s32.totalorder %s19, %s22
    %p31 = scmp.eq.s32.totalorder %s14, 1
    %p32 = por %p30, %p31
    %p33 = scmp.ne.s32.totalorder %s22, %s23
    %p34 = scmp.eq.s32.totalorder %s14, 0
    %p35 = por %p33, %p34
    %p36 = scmp.ne.s32.totalorder %s22, %s23
    %p37 = scmp.eq.s32.totalorder %s15, 1
    %p38 = por %p36, %p37
    %p40 = scmp.ne.s32.totalorder %s23, %s39
    %p41 = scmp.eq.s32.totalorder %s15, 0
    %p42 = por %p40, %p41
    %s44 = sadd.s32 %s43, 1
    %p47 = scmp.eq.s32.totalorder %s9, 1
    %p48 = scmp.ne.s32.totalorder %s43, %s45
    %p49 = scmp.eq.s32.totalorder %s9, 0
    %p50 = por %p48, %p49
    %p51 = scmp.ne.s32.totalorder %s43, %s45
    %p52 = scmp.eq.s32.totalorder %s14, 1
    %p53 = por %p51, %p52
    %p54 = scmp.ne.s32.totalorder %s45, %s46
    %p55 = scmp.eq.s32.totalorder %s14, 0
    %p56 = por %p54, %p55
    %p57 = scmp.ne.s32.totalorder %s45, %s46
    %p58 = scmp.eq.s32.totalorder %s15, 1
    %p59 = por %p57, %p58
    %p61 = scmp.ne.s32.totalorder %s46, %s60
    %p62 = scmp.eq.s32.totalorder %s15, 0
    %p63 = por %p61, %p62
    %s65 = sadd.s32 %s64, 1
    %p68 = scmp.eq.s32.totalorder %s9, 1
    %p69 = scmp.ne.s32.totalorder %s64, %s66
    %p70 = scmp.eq.s32.totalorder %s9, 0
    %p71 = por %p69, %p70
    %p72 = scmp.ne.s32.totalorder %s64, %s66
    %p73 = scmp.eq.s32.totalorder %s14, 1
    %p74 = por %p72, %p73
    %p75 = scmp.ne.s32.totalorder %s66, %s67
    %p76 = scmp.eq.s32.totalorder %s14, 0
    %p77 = por %p75, %p76
    %p78 = scmp.ne.s32.totalorder %s66, %s67
    %p79 = scmp.eq.s32.totalorder %s15, 1
    %p80 = por %p78, %p79
    %p82 = scmp.ne.s32.totalorder %s67, %s81
    %p83 = scmp.eq.s32.totalorder %s15, 0
    %p84 = por %p82, %p83
    %s85 = ssub.s32 %s9, %s16
    %p86 = scmp.eq.s32.totalorder %s85, 0
    %s88 = sadd.s32 %s87, 1
    %s89 = scalar_select %p86, %s87, %s88
    %p92 = pneg %p86
    %p93 = scmp.eq.s32.totalorder %s9, 1
    %p94 = por %p92, %p93
    %p95 = scmp.ne.s32.totalorder %s87, %s90
    %p96 = scmp.eq.s32.totalorder %s9, 0
    %p97 = por %p95, %p96
    %p98 = scmp.ne.s32.totalorder %s87, %s90
    %p99 = scmp.eq.s32.totalorder %s14, 1
    %p100 = por %p98, %p99
    %p101 = scmp.ne.s32.totalorder %s90, %s91
    %p102 = scmp.eq.s32.totalorder %s14, 0
    %p103 = por %p101, %p102
    %p104 = scmp.ne.s32.totalorder %s90, %s91
    %p105 = scmp.eq.s32.totalorder %s15, 1
    %p106 = por %p104, %p105
    %p108 = scmp.ne.s32.totalorder %s91, %s107
    %p109 = scmp.eq.s32.totalorder %s15, 0
    %p110 = por %p108, %p109
    %p111 = scmp.le.s32.totalorder 1, %s9
    %p112 = scmp.lt.s32.totalorder %s9, 3
    %p113 = pnand %p111, %p112
    %p114 = pneg %p113
    // Predicated region
    $region9: #{pinn_u_forward.1} parent=5 // pred_check
      _
    $region10: #{pinn_u_forward.1} parent=5 // pred_check_branch
      %116 = sbr.rel (%p113) target = $region12
    $region11: #{pinn_u_forward.1} parent=5 // pred_region
      %s117 = ssub.s32 %s9, 1
      // Predicated region
      $region13: #{pinn_u_forward.1} parent=11 // pred_check
        %p118 = pneg %p56
      $region14: #{pinn_u_forward.1} parent=11 // pred_check_branch
        %120 = sbr.rel (%p118) target = $region16
      $region15: #{pinn_u_forward.1} parent=11 // pred_region
        _
      $region16: #{pinn_u_forward.1} parent=11 // pred_fallthru
        _
      // Predicated region
      $region17: #{pinn_u_forward.1} parent=11 // pred_check
        %p121 = pneg %p77
      $region18: #{pinn_u_forward.1} parent=11 // pred_check_branch
        %123 = sbr.rel (%p121) target = $region20
      $region19: #{pinn_u_forward.1} parent=11 // pred_region
        _
      $region20: #{pinn_u_forward.1} parent=11 // pred_fallthru
        _
    $region12: #{pinn_u_forward.1} parent=5 // pred_fallthru
      _
    %p124 = scmp.lt.s32.totalorder %s9, 2
    // Predicated region
    $region21: #{pinn_u_forward.1} parent=5 // pred_check
      %p125 = pneg %p124
    $region22: #{pinn_u_forward.1} parent=5 // pred_check_branch
      %127 = sbr.rel (%p125) target = $region24
    $region23: #{pinn_u_forward.1} parent=5 // pred_region
      // Predicated region
      $region25: #{pinn_u_forward.1} parent=23 // pred_check
        %p128 = pneg %p29
      $region26: #{pinn_u_forward.1} parent=23 // pred_check_branch
        %130 = sbr.rel (%p128) target = $region28
      $region27: #{pinn_u_forward.1} parent=23 // pred_region
        %s131 = smul.u32 4, %s9
        %p132 = scmp.lt.s32.totalorder %s131, 7
        %s133 = scalar_select %p132, %s131, 7
        %s134 = smul.addr %s133, 4
        %s135 = scalar_lea.vmem %s0, %s134
        %s136 = smul.u32 4, %s9
      $region28: #{pinn_u_forward.1} parent=23 // pred_fallthru
        _
    $region24: #{pinn_u_forward.1} parent=5 // pred_fallthru
      _
    %p137 = scmp.le.s32.totalorder 1, %s9
    %p138 = scmp.lt.s32.totalorder %s9, 3
    %p139 = pnand %p137, %p138
    %p140 = pneg %p139
    // Predicated region
    $region29: #{pinn_u_forward.1} parent=5 // pred_check
      _
    $region30: #{pinn_u_forward.1} parent=5 // pred_check_branch
      %142 = sbr.rel (%p139) target = $region32
    $region31: #{pinn_u_forward.1} parent=5 // pred_region
      %s143 = ssub.s32 %s9, 1
      %s144 = smul.u32 4, %s14
      %p145 = scmp.lt.s32.totalorder %s144, 7
      %s146 = scalar_select %p145, %s144, 7
      %s147 = smul.addr %s146, 4
      %s148 = scalar_lea.vmem %s0, %s147
      %p149 = pneg %p35
      %p150 = pneg %p32
      %p151 = pneg %p56
      %p152 = pneg %p53
      %p153 = pneg %p77
      %p154 = pneg %p74
      %p155 = pneg %p103
      %p156 = pneg %p100
      %s157 = smul.u32 4, %s14
      %p158 = scmp.lt.s32.totalorder %s157, 7
      %s159 = scalar_select %p158, %s157, 7
      %s160 = scalar_lea.vmem %s3, %s159
      %s161 = smul.u32 4, %s14
      %p162 = scmp.lt.s32.totalorder %s161, 7
      %s163 = scalar_select %p162, %s161, 7
      %s164 = smul.addr %s163, 4
      %s165 = scalar_lea.vmem %s0, %s164
      %s166 = smul.u32 4, %s14
      %s167 = smul.u32 4, %s14
      %p168 = scmp.lt.s32.totalorder %s167, 7
      %s169 = scalar_select %p168, %s167, 7
      %s170 = scalar_lea.vmem %s3, %s169
      %s171 = smul.u32 4, %s14
      %v173 = vld [vmem:[%s165] sm:$0x77]
      %v174 = vld [vmem:[%s165 + $0x8] sm:$0x77]
      %v175 = vld [vmem:[%s1] sm:$0xf]
      %v176 = vld [vmem:[%s1 + $0x4] sm:$0xf]
      %v177 = vld [vmem:[%s1 + $0x8] sm:$0xf]
      %v178 = vunpack.c.l.bf16 %v175
      %v179 = vunpack.c.l.bf16 %v176
      %v180 = vunpack.c.l.bf16 %v177
      %v181 = vld [vmem:[%s2] sm:$0xff]
      %v182 = vld [vmem:[%s2 + $0x8] sm:$0xff]
      %v183 = vld [vmem:[%s2 + $0x10] sm:$0xff]
      %185 = vset.pattern.permute.xlu0 0
      %186 = vperm.xlu0 %185, %v178
      %v187 = vpop.permute.xlu0 %186
      %190 = vset.pattern.permute.xlu0 0
      %191 = vperm.xlu0 %190, %v179
      %v192 = vpop.permute.xlu0 %191
      %195 = vset.pattern.permute.xlu0 0
      %196 = vperm.xlu0 %195, %v180
      %v197 = vpop.permute.xlu0 %196
      %v201 = vperm.slane %v173, 0
      %v202 = vperm.slane %v173, 4
      %v203 = vperm.slane %v174, 0
      %v204 = vperm.slane %v174, 4
      %v209 = vperm.slane %v201, 0
      %v210 = vperm.slane %v202, 0
      %v211 = vperm.slane %v203, 0
      %v212 = vperm.slane %v204, 0
      %v213 = vmul.f32 %v187, %v209
      %v214 = vmul.f32 %v187, %v210
      %v215 = vmul.f32 %v187, %v211
      %v216 = vmul.f32 %v187, %v212
      %v217 = vmul.f32 %v192, %v209
      %v218 = vmul.f32 %v192, %v210
      %v219 = vmul.f32 %v192, %v211
      %v220 = vmul.f32 %v192, %v212
      %v221 = vmul.f32 %v197, %v209
      %v222 = vmul.f32 %v197, %v210
      %v223 = vmul.f32 %v197, %v211
      %v224 = vmul.f32 %v197, %v212
      %226 = vset.pattern.permute.xlu0 0
      %227 = vperm.xlu0 %226, %v181
      %v228 = vpop.permute.xlu0 %227
      %231 = vset.pattern.permute.xlu0 0
      %232 = vperm.xlu0 %231, %v182
      %v233 = vpop.permute.xlu0 %232
      %236 = vset.pattern.permute.xlu0 0
      %237 = vperm.xlu0 %236, %v183
      %v238 = vpop.permute.xlu0 %237
      %v240 = vadd.f32 %v228, %v213
      %v241 = vadd.f32 %v228, %v214
      %v242 = vadd.f32 %v228, %v215
      %v243 = vadd.f32 %v228, %v216
      %v244 = vadd.f32 %v233, %v217
      %v245 = vadd.f32 %v233, %v218
      %v246 = vadd.f32 %v233, %v219
      %v247 = vadd.f32 %v233, %v220
      %v248 = vadd.f32 %v238, %v221
      %v249 = vadd.f32 %v238, %v222
      %v250 = vadd.f32 %v238, %v223
      %v251 = vadd.f32 %v238, %v224
      %252 = vset.pattern.permute.xlu0 1
      %253 = vperm.xlu0 %252, %v178
      %v254 = vpop.permute.xlu0 %253
      %256 = vset.pattern.permute.xlu0 1
      %257 = vperm.xlu0 %256, %v179
      %v258 = vpop.permute.xlu0 %257
      %260 = vset.pattern.permute.xlu0 1
      %261 = vperm.xlu0 %260, %v180
      %v262 = vpop.permute.xlu0 %261
      %v264 = vperm.slane %v173, 1
      %v265 = vperm.slane %v173, 5
      %v266 = vperm.slane %v174, 1
      %v267 = vperm.slane %v174, 5
      %v272 = vperm.slane %v264, 1
      %v273 = vperm.slane %v265, 1
      %v274 = vperm.slane %v266, 1
      %v275 = vperm.slane %v267, 1
      %v276 = vmul.f32 %v254, %v272
      %v277 = vmul.f32 %v254, %v273
      %v278 = vmul.f32 %v254, %v274
      %v279 = vmul.f32 %v254, %v275
      %v280 = vmul.f32 %v258, %v272
      %v281 = vmul.f32 %v258, %v273
      %v282 = vmul.f32 %v258, %v274
      %v283 = vmul.f32 %v258, %v275
      %v284 = vmul.f32 %v262, %v272
      %v285 = vmul.f32 %v262, %v273
      %v286 = vmul.f32 %v262, %v274
      %v287 = vmul.f32 %v262, %v275
      %v288 = vadd.f32 %v240, %v276
      %v289 = vadd.f32 %v241, %v277
      %v290 = vadd.f32 %v242, %v278
      %v291 = vadd.f32 %v243, %v279
      %v292 = vadd.f32 %v244, %v280
      %v293 = vadd.f32 %v245, %v281
      %v294 = vadd.f32 %v246, %v282
      %v295 = vadd.f32 %v247, %v283
      %v296 = vadd.f32 %v248, %v284
      %v297 = vadd.f32 %v249, %v285
      %v298 = vadd.f32 %v250, %v286
      %v299 = vadd.f32 %v251, %v287
      %300 = vset.pattern.permute.xlu0 2
      %301 = vperm.xlu0 %300, %v178
      %v302 = vpop.permute.xlu0 %301
      %304 = vset.pattern.permute.xlu0 2
      %305 = vperm.xlu0 %304, %v179
      %v306 = vpop.permute.xlu0 %305
      %308 = vset.pattern.permute.xlu0 2
      %309 = vperm.xlu0 %308, %v180
      %v310 = vpop.permute.xlu0 %309
      %v312 = vperm.slane %v173, 2
      %v313 = vperm.slane %v173, 6
      %v314 = vperm.slane %v174, 2
      %v315 = vperm.slane %v174, 6
      %v320 = vperm.slane %v312, 2
      %v321 = vperm.slane %v313, 2
      %v322 = vperm.slane %v314, 2
      %v323 = vperm.slane %v315, 2
      %v324 = vmul.f32 %v302, %v320
      %v325 = vmul.f32 %v302, %v321
      %v326 = vmul.f32 %v302, %v322
      %v327 = vmul.f32 %v302, %v323
      %v328 = vmul.f32 %v306, %v320
      %v329 = vmul.f32 %v306, %v321
      %v330 = vmul.f32 %v306, %v322
      %v331 = vmul.f32 %v306, %v323
      %v332 = vmul.f32 %v310, %v320
      %v333 = vmul.f32 %v310, %v321
      %v334 = vmul.f32 %v310, %v322
      %v335 = vmul.f32 %v310, %v323
      %v336 = vadd.f32 %v288, %v324
      %v337 = vadd.f32 %v289, %v325
      %v338 = vadd.f32 %v290, %v326
      %v339 = vadd.f32 %v291, %v327
      %v340 = vadd.f32 %v292, %v328
      %v341 = vadd.f32 %v293, %v329
      %v342 = vadd.f32 %v294, %v330
      %v343 = vadd.f32 %v295, %v331
      %v344 = vadd.f32 %v296, %v332
      %v345 = vadd.f32 %v297, %v333
      %v346 = vadd.f32 %v298, %v334
      %v347 = vadd.f32 %v299, %v335
      %v348 = vmul.f32 %v336, 0.5
      %v349 = vmul.f32 %v337, 0.5
      %v350 = vmul.f32 %v338, 0.5
      %v351 = vmul.f32 %v339, 0.5
      %v352 = vmul.f32 %v340, 0.5
      %v353 = vmul.f32 %v341, 0.5
      %v354 = vmul.f32 %v342, 0.5
      %v355 = vmul.f32 %v343, 0.5
      %v356 = vmul.f32 %v344, 0.5
      %v357 = vmul.f32 %v345, 0.5
      %v358 = vmul.f32 %v346, 0.5
      %v359 = vmul.f32 %v347, 0.5
      %v360 = vtanh.pop %v348
      %v361 = vtanh.pop %v349
      %v362 = vtanh.pop %v350
      %v363 = vtanh.pop %v351
      %v364 = vtanh.pop %v352
      %v365 = vtanh.pop %v353
      %v366 = vtanh.pop %v354
      %v367 = vtanh.pop %v355
      %v368 = vtanh.pop %v356
      %v369 = vtanh.pop %v357
      %v370 = vtanh.pop %v358
      %v371 = vtanh.pop %v359
      %v372 = vmul.f32 %v360, 0.5
      %v373 = vmul.f32 %v361, 0.5
      %v374 = vmul.f32 %v362, 0.5
      %v375 = vmul.f32 %v363, 0.5
      %v376 = vmul.f32 %v364, 0.5
      %v377 = vmul.f32 %v365, 0.5
      %v378 = vmul.f32 %v366, 0.5
      %v379 = vmul.f32 %v367, 0.5
      %v380 = vmul.f32 %v368, 0.5
      %v381 = vmul.f32 %v369, 0.5
      %v382 = vmul.f32 %v370, 0.5
      %v383 = vmul.f32 %v371, 0.5
      %v384 = vadd.f32 %v372, 0.5
      %v385 = vadd.f32 %v373, 0.5
      %v386 = vadd.f32 %v374, 0.5
      %v387 = vadd.f32 %v375, 0.5
      %v388 = vadd.f32 %v376, 0.5
      %v389 = vadd.f32 %v377, 0.5
      %v390 = vadd.f32 %v378, 0.5
      %v391 = vadd.f32 %v379, 0.5
      %v392 = vadd.f32 %v380, 0.5
      %v393 = vadd.f32 %v381, 0.5
      %v394 = vadd.f32 %v382, 0.5
      %v395 = vadd.f32 %v383, 0.5
      %v396 = vmul.f32 %v336, %v384
      %v397 = vmul.f32 %v337, %v385
      %v398 = vmul.f32 %v338, %v386
      %v399 = vmul.f32 %v339, %v387
      %v400 = vmul.f32 %v340, %v388
      %v401 = vmul.f32 %v341, %v389
      %v402 = vmul.f32 %v342, %v390
      %v403 = vmul.f32 %v343, %v391
      %v404 = vmul.f32 %v344, %v392
      %v405 = vmul.f32 %v345, %v393
      %v406 = vmul.f32 %v346, %v394
      %v407 = vmul.f32 %v347, %v395
      %s408 = scalar_lea.vmem %s1, 16
      %v409 = vld [vmem:[%s408] sm:$0xf]
      %v410 = vld [vmem:[%s408 + $0x4] sm:$0xf]
      %v411 = vld [vmem:[%s408 + $0x8] sm:$0xf]
      %v412 = vpack.c.bf16 %v400, %v396
      %v413 = vpack.c.bf16 %v401, %v397
      %v414 = vpack.c.bf16 %v402, %v398
      %v415 = vpack.c.bf16 %v403, %v399
      %v416 = vpack.c.bf16 %v404, %v404
      %v417 = vpack.c.bf16 %v405, %v405
      %v418 = vpack.c.bf16 %v406, %v406
      %v419 = vpack.c.bf16 %v407, %v407
      %s420 = scalar_lea.vmem %s2, 32
      %v421 = vld [vmem:[%s420] sm:$0xff]
      %v422 = vld [vmem:[%s420 + $0x8] sm:$0xff]
      %v423 = vld [vmem:[%s420 + $0x10] sm:$0xff]
      %425 = vset.pattern.permute.xlu0 0
      %426 = vperm.xlu0 %425, %v421
      %v427 = vpop.permute.xlu0 %426
      %430 = vset.pattern.permute.xlu0 0
      %431 = vperm.xlu0 %430, %v422
      %v432 = vpop.permute.xlu0 %431
      %435 = vset.pattern.permute.xlu0 0
      %436 = vperm.xlu0 %435, %v423
      %v437 = vpop.permute.xlu0 %436
      %v442 = vunpack.c.l.b16 %v409
      %v443 = vunpack.c.l.b16 %v410
      %v444 = vunpack.c.l.b16 %v411
      %v445 = vpack.c.b16 %v443, %v442
      %v446 = vpack.c.b16 %v444, %v444
      %vm447 = vcmask 195584
      %v449 = vsel %vm447, %v445, 0
      %v452 = vsel %vm447, %v446, 0
      %vm454 = vcmask 1043456
      %v456 = vsel %vm454, %v416, 0
      %v459 = vsel %vm454, %v417, 0
      %v462 = vsel %vm454, %v418, 0
      %v465 = vsel %vm454, %v419, 0
      %467 = vmatpush.bf16.msra.mxu0 0
      %468 = vmatpush.bf16.msra.mxu0 0
      %469 = vmatpush.bf16.msra.mxu0 0
      %470 = vmatpush.bf16.msra.mxu0 0
      %471 = vmatpush.bf16.msra.mxu0 0
      %472 = vmatpush.bf16.msra.mxu0 0
      %473 = vmatpush.bf16.msra.mxu0 %v456
      %474 = vmatpush.bf16.msra.mxu0 %v412
      %475 = vmatmul.bf16.gmra.mxu0 %v449
      %v476 = vpop.f32.mrf.mxu0
      %v477 = vadd.f32 %v427, %v476
      %v478 = vpop.f32.mrf.mxu0
      %v479 = vadd.f32 %v432, %v478
      %480 = vmatmul.bf16.gmra.mxu0 %v452
      %v481 = vpop.f32.mrf.mxu0
      %v482 = vadd.f32 %v437, %v481
      %v483 = vpop.f32.mrf.mxu0
      %484 = vdwg.mxu0
      %485 = vmatpush.bf16.msra.mxu0 0
      %486 = vmatpush.bf16.msra.mxu0 0
      %487 = vmatpush.bf16.msra.mxu0 0
      %488 = vmatpush.bf16.msra.mxu0 0
      %489 = vmatpush.bf16.msra.mxu0 0
      %490 = vmatpush.bf16.msra.mxu0 0
      %491 = vmatpush.bf16.msra.mxu0 %v459
      %492 = vmatpush.bf16.msra.mxu0 %v413
      %493 = vmatmul.bf16.gmra.mxu0 %v449
      %v494 = vpop.f32.mrf.mxu0
      %v495 = vadd.f32 %v427, %v494
      %v496 = vpop.f32.mrf.mxu0
      %v497 = vadd.f32 %v432, %v496
      %498 = vmatmul.bf16.gmra.mxu0 %v452
      %v499 = vpop.f32.mrf.mxu0
      %v500 = vadd.f32 %v437, %v499
      %v501 = vpop.f32.mrf.mxu0
      %502 = vdwg.mxu0
      %503 = vmatpush.bf16.msra.mxu0 0
      %504 = vmatpush.bf16.msra.mxu0 0
      %505 = vmatpush.bf16.msra.mxu0 0
      %506 = vmatpush.bf16.msra.mxu0 0
      %507 = vmatpush.bf16.msra.mxu0 0
      %508 = vmatpush.bf16.msra.mxu0 0
      %509 = vmatpush.bf16.msra.mxu0 %v462
      %510 = vmatpush.bf16.msra.mxu0 %v414
      %511 = vmatmul.bf16.gmra.mxu0 %v449
      %v512 = vpop.f32.mrf.mxu0
      %v513 = vadd.f32 %v427, %v512
      %v514 = vpop.f32.mrf.mxu0
      %v515 = vadd.f32 %v432, %v514
      %516 = vmatmul.bf16.gmra.mxu0 %v452
      %v517 = vpop.f32.mrf.mxu0
      %v518 = vadd.f32 %v437, %v517
      %v519 = vpop.f32.mrf.mxu0
      %520 = vdwg.mxu0
      %521 = vmatpush.bf16.msra.mxu0 0
      %522 = vmatpush.bf16.msra.mxu0 0
      %523 = vmatpush.bf16.msra.mxu0 0
      %524 = vmatpush.bf16.msra.mxu0 0
      %525 = vmatpush.bf16.msra.mxu0 0
      %526 = vmatpush.bf16.msra.mxu0 0
      %527 = vmatpush.bf16.msra.mxu0 %v465
      %528 = vmatpush.bf16.msra.mxu0 %v415
      %529 = vmatmul.bf16.gmra.mxu0 %v449
      %v530 = vpop.f32.mrf.mxu0
      %v531 = vadd.f32 %v427, %v530
      %v532 = vpop.f32.mrf.mxu0
      %v533 = vadd.f32 %v432, %v532
      %534 = vmatmul.bf16.gmra.mxu0 %v452
      %v535 = vpop.f32.mrf.mxu0
      %v536 = vadd.f32 %v437, %v535
      %v537 = vpop.f32.mrf.mxu0
      %538 = vdwg.mxu0
      %v539 = vmul.f32 %v477, 0.5
      %v540 = vmul.f32 %v495, 0.5
      %v541 = vmul.f32 %v513, 0.5
      %v542 = vmul.f32 %v531, 0.5
      %v543 = vmul.f32 %v479, 0.5
      %v544 = vmul.f32 %v497, 0.5
      %v545 = vmul.f32 %v515, 0.5
      %v546 = vmul.f32 %v533, 0.5
      %v547 = vmul.f32 %v482, 0.5
      %v548 = vmul.f32 %v500, 0.5
      %v549 = vmul.f32 %v518, 0.5
      %v550 = vmul.f32 %v536, 0.5
      %v551 = vtanh.pop %v539
      %v552 = vtanh.pop %v540
      %v553 = vtanh.pop %v541
      %v554 = vtanh.pop %v542
      %v555 = vtanh.pop %v543
      %v556 = vtanh.pop %v544
      %v557 = vtanh.pop %v545
      %v558 = vtanh.pop %v546
      %v559 = vtanh.pop %v547
      %v560 = vtanh.pop %v548
      %v561 = vtanh.pop %v549
      %v562 = vtanh.pop %v550
      %v563 = vmul.f32 %v551, 0.5
      %v564 = vmul.f32 %v552, 0.5
      %v565 = vmul.f32 %v553, 0.5
      %v566 = vmul.f32 %v554, 0.5
      %v567 = vmul.f32 %v555, 0.5
      %v568 = vmul.f32 %v556, 0.5
      %v569 = vmul.f32 %v557, 0.5
      %v570 = vmul.f32 %v558, 0.5
      %v571 = vmul.f32 %v559, 0.5
      %v572 = vmul.f32 %v560, 0.5
      %v573 = vmul.f32 %v561, 0.5
      %v574 = vmul.f32 %v562, 0.5
      %v575 = vadd.f32 %v563, 0.5
      %v576 = vadd.f32 %v564, 0.5
      %v577 = vadd.f32 %v565, 0.5
      %v578 = vadd.f32 %v566, 0.5
      %v579 = vadd.f32 %v567, 0.5
      %v580 = vadd.f32 %v568, 0.5
      %v581 = vadd.f32 %v569, 0.5
      %v582 = vadd.f32 %v570, 0.5
      %v583 = vadd.f32 %v571, 0.5
      %v584 = vadd.f32 %v572, 0.5
      %v585 = vadd.f32 %v573, 0.5
      %v586 = vadd.f32 %v574, 0.5
      %v587 = vmul.f32 %v477, %v575
      %v588 = vmul.f32 %v495, %v576
      %v589 = vmul.f32 %v513, %v577
      %v590 = vmul.f32 %v531, %v578
      %v591 = vmul.f32 %v479, %v579
      %v592 = vmul.f32 %v497, %v580
      %v593 = vmul.f32 %v515, %v581
      %v594 = vmul.f32 %v533, %v582
      %v595 = vmul.f32 %v482, %v583
      %v596 = vmul.f32 %v500, %v584
      %v597 = vmul.f32 %v518, %v585
      %v598 = vmul.f32 %v536, %v586
      %s599 = scalar_lea.vmem %s1, 32
      %v600 = vld [vmem:[%s599] sm:$0xf]
      %v601 = vld [vmem:[%s599 + $0x4] sm:$0xf]
      %v602 = vld [vmem:[%s599 + $0x8] sm:$0xf]
      %v603 = vpack.c.bf16 %v591, %v587
      %v604 = vpack.c.bf16 %v592, %v588
      %v605 = vpack.c.bf16 %v593, %v589
      %v606 = vpack.c.bf16 %v594, %v590
      %v607 = vpack.c.bf16 %v595, %v595
      %v608 = vpack.c.bf16 %v596, %v596
      %v609 = vpack.c.bf16 %v597, %v597
      %v610 = vpack.c.bf16 %v598, %v598
      %s611 = scalar_lea.vmem %s2, 64
      %v612 = vld [vmem:[%s611] sm:$0xff]
      %v613 = vld [vmem:[%s611 + $0x8] sm:$0xff]
      %v614 = vld [vmem:[%s611 + $0x10] sm:$0xff]
      %616 = vset.pattern.permute.xlu0 0
      %617 = vperm.xlu0 %616, %v612
      %v618 = vpop.permute.xlu0 %617
      %621 = vset.pattern.permute.xlu0 0
      %622 = vperm.xlu0 %621, %v613
      %v623 = vpop.permute.xlu0 %622
      %626 = vset.pattern.permute.xlu0 0
      %627 = vperm.xlu0 %626, %v614
      %v628 = vpop.permute.xlu0 %627
      %v633 = vunpack.c.l.b16 %v600
      %v634 = vunpack.c.l.b16 %v601
      %v635 = vunpack.c.l.b16 %v602
      %v636 = vpack.c.b16 %v634, %v633
      %v637 = vpack.c.b16 %v635, %v635
      %v639 = vsel %vm447, %v636, 0
      %v642 = vsel %vm447, %v637, 0
      %v645 = vsel %vm454, %v607, 0
      %v648 = vsel %vm454, %v608, 0
      %v651 = vsel %vm454, %v609, 0
      %v654 = vsel %vm454, %v610, 0
      %656 = vmatpush.bf16.msra.mxu0 0
      %657 = vmatpush.bf16.msra.mxu0 0
      %658 = vmatpush.bf16.msra.mxu0 0
      %659 = vmatpush.bf16.msra.mxu0 0
      %660 = vmatpush.bf16.msra.mxu0 0
      %661 = vmatpush.bf16.msra.mxu0 0
      %662 = vmatpush.bf16.msra.mxu0 %v645
      %663 = vmatpush.bf16.msra.mxu0 %v603
      %664 = vmatmul.bf16.gmra.mxu0 %v639
      %v665 = vpop.f32.mrf.mxu0
      %v666 = vadd.f32 %v618, %v665
      %v667 = vpop.f32.mrf.mxu0
      %v668 = vadd.f32 %v623, %v667
      %669 = vmatmul.bf16.gmra.mxu0 %v642
      %v670 = vpop.f32.mrf.mxu0
      %v671 = vadd.f32 %v628, %v670
      %v672 = vpop.f32.mrf.mxu0
      %673 = vdwg.mxu0
      %674 = vmatpush.bf16.msra.mxu0 0
      %675 = vmatpush.bf16.msra.mxu0 0
      %676 = vmatpush.bf16.msra.mxu0 0
      %677 = vmatpush.bf16.msra.mxu0 0
      %678 = vmatpush.bf16.msra.mxu0 0
      %679 = vmatpush.bf16.msra.mxu0 0
      %680 = vmatpush.bf16.msra.mxu0 %v648
      %681 = vmatpush.bf16.msra.mxu0 %v604
      %682 = vmatmul.bf16.gmra.mxu0 %v639
      %v683 = vpop.f32.mrf.mxu0
      %v684 = vadd.f32 %v618, %v683
      %v685 = vpop.f32.mrf.mxu0
      %v686 = vadd.f32 %v623, %v685
      %687 = vmatmul.bf16.gmra.mxu0 %v642
      %v688 = vpop.f32.mrf.mxu0
      %v689 = vadd.f32 %v628, %v688
      %v690 = vpop.f32.mrf.mxu0
      %691 = vdwg.mxu0
      %692 = vmatpush.bf16.msra.mxu0 0
      %693 = vmatpush.bf16.msra.mxu0 0
      %694 = vmatpush.bf16.msra.mxu0 0
      %695 = vmatpush.bf16.msra.mxu0 0
      %696 = vmatpush.bf16.msra.mxu0 0
      %697 = vmatpush.bf16.msra.mxu0 0
      %698 = vmatpush.bf16.msra.mxu0 %v651
      %699 = vmatpush.bf16.msra.mxu0 %v605
      %700 = vmatmul.bf16.gmra.mxu0 %v639
      %v701 = vpop.f32.mrf.mxu0
      %v702 = vadd.f32 %v618, %v701
      %v703 = vpop.f32.mrf.mxu0
      %v704 = vadd.f32 %v623, %v703
      %705 = vmatmul.bf16.gmra.mxu0 %v642
      %v706 = vpop.f32.mrf.mxu0
      %v707 = vadd.f32 %v628, %v706
      %v708 = vpop.f32.mrf.mxu0
      %709 = vdwg.mxu0
      %710 = vmatpush.bf16.msra.mxu0 0
      %711 = vmatpush.bf16.msra.mxu0 0
      %712 = vmatpush.bf16.msra.mxu0 0
      %713 = vmatpush.bf16.msra.mxu0 0
      %714 = vmatpush.bf16.msra.mxu0 0
      %715 = vmatpush.bf16.msra.mxu0 0
      %716 = vmatpush.bf16.msra.mxu0 %v654
      %717 = vmatpush.bf16.msra.mxu0 %v606
      %718 = vmatmul.bf16.gmra.mxu0 %v639
      %v719 = vpop.f32.mrf.mxu0
      %v720 = vadd.f32 %v618, %v719
      %v721 = vpop.f32.mrf.mxu0
      %v722 = vadd.f32 %v623, %v721
      %723 = vmatmul.bf16.gmra.mxu0 %v642
      %v724 = vpop.f32.mrf.mxu0
      %v725 = vadd.f32 %v628, %v724
      %v726 = vpop.f32.mrf.mxu0
      %727 = vdwg.mxu0
      %v728 = vmul.f32 %v666, 0.5
      %v729 = vmul.f32 %v684, 0.5
      %v730 = vmul.f32 %v702, 0.5
      %v731 = vmul.f32 %v720, 0.5
      %v732 = vmul.f32 %v668, 0.5
      %v733 = vmul.f32 %v686, 0.5
      %v734 = vmul.f32 %v704, 0.5
      %v735 = vmul.f32 %v722, 0.5
      %v736 = vmul.f32 %v671, 0.5
      %v737 = vmul.f32 %v689, 0.5
      %v738 = vmul.f32 %v707, 0.5
      %v739 = vmul.f32 %v725, 0.5
      %v740 = vtanh.pop %v728
      %v741 = vtanh.pop %v729
      %v742 = vtanh.pop %v730
      %v743 = vtanh.pop %v731
      %v744 = vtanh.pop %v732
      %v745 = vtanh.pop %v733
      %v746 = vtanh.pop %v734
      %v747 = vtanh.pop %v735
      %v748 = vtanh.pop %v736
      %v749 = vtanh.pop %v737
      %v750 = vtanh.pop %v738
      %v751 = vtanh.pop %v739
      %v752 = vmul.f32 %v740, 0.5
      %v753 = vmul.f32 %v741, 0.5
      %v754 = vmul.f32 %v742, 0.5
      %v755 = vmul.f32 %v743, 0.5
      %v756 = vmul.f32 %v744, 0.5
      %v757 = vmul.f32 %v745, 0.5
      %v758 = vmul.f32 %v746, 0.5
      %v759 = vmul.f32 %v747, 0.5
      %v760 = vmul.f32 %v748, 0.5
      %v761 = vmul.f32 %v749, 0.5
      %v762 = vmul.f32 %v750, 0.5
      %v763 = vmul.f32 %v751, 0.5
      %v764 = vadd.f32 %v752, 0.5
      %v765 = vadd.f32 %v753, 0.5
      %v766 = vadd.f32 %v754, 0.5
      %v767 = vadd.f32 %v755, 0.5
      %v768 = vadd.f32 %v756, 0.5
      %v769 = vadd.f32 %v757, 0.5
      %v770 = vadd.f32 %v758, 0.5
      %v771 = vadd.f32 %v759, 0.5
      %v772 = vadd.f32 %v760, 0.5
      %v773 = vadd.f32 %v761, 0.5
      %v774 = vadd.f32 %v762, 0.5
      %v775 = vadd.f32 %v763, 0.5
      %v776 = vmul.f32 %v666, %v764
      %v777 = vmul.f32 %v684, %v765
      %v778 = vmul.f32 %v702, %v766
      %v779 = vmul.f32 %v720, %v767
      %v780 = vmul.f32 %v668, %v768
      %v781 = vmul.f32 %v686, %v769
      %v782 = vmul.f32 %v704, %v770
      %v783 = vmul.f32 %v722, %v771
      %v784 = vmul.f32 %v671, %v772
      %v785 = vmul.f32 %v689, %v773
      %v786 = vmul.f32 %v707, %v774
      %v787 = vmul.f32 %v725, %v775
      %s788 = scalar_lea.vmem %s1, 48
      %v789 = vld [vmem:[%s788] sm:$0xf]
      %v790 = vld [vmem:[%s788 + $0x4] sm:$0xf]
      %v791 = vld [vmem:[%s788 + $0x8] sm:$0xf]
      %v792 = vpack.c.bf16 %v780, %v776
      %v793 = vpack.c.bf16 %v781, %v777
      %v794 = vpack.c.bf16 %v782, %v778
      %v795 = vpack.c.bf16 %v783, %v779
      %v796 = vpack.c.bf16 %v784, %v784
      %v797 = vpack.c.bf16 %v785, %v785
      %v798 = vpack.c.bf16 %v786, %v786
      %v799 = vpack.c.bf16 %v787, %v787
      %s800 = scalar_lea.vmem %s2, 96
      %v801 = vld [vmem:[%s800] sm:$0xff]
      %v802 = vld [vmem:[%s800 + $0x8] sm:$0xff]
      %v803 = vld [vmem:[%s800 + $0x10] sm:$0xff]
      %805 = vset.pattern.permute.xlu0 0
      %806 = vperm.xlu0 %805, %v801
      %v807 = vpop.permute.xlu0 %806
      %810 = vset.pattern.permute.xlu0 0
      %811 = vperm.xlu0 %810, %v802
      %v812 = vpop.permute.xlu0 %811
      %815 = vset.pattern.permute.xlu0 0
      %816 = vperm.xlu0 %815, %v803
      %v817 = vpop.permute.xlu0 %816
      %v822 = vunpack.c.l.b16 %v789
      %v823 = vunpack.c.l.b16 %v790
      %v824 = vunpack.c.l.b16 %v791
      %v825 = vpack.c.b16 %v823, %v822
      %v826 = vpack.c.b16 %v824, %v824
      %v828 = vsel %vm447, %v825, 0
      %v831 = vsel %vm447, %v826, 0
      %v834 = vsel %vm454, %v796, 0
      %v837 = vsel %vm454, %v797, 0
      %v840 = vsel %vm454, %v798, 0
      %v843 = vsel %vm454, %v799, 0
      %845 = vmatpush.bf16.msra.mxu0 0
      %846 = vmatpush.bf16.msra.mxu0 0
      %847 = vmatpush.bf16.msra.mxu0 0
      %848 = vmatpush.bf16.msra.mxu0 0
      %849 = vmatpush.bf16.msra.mxu0 0
      %850 = vmatpush.bf16.msra.mxu0 0
      %851 = vmatpush.bf16.msra.mxu0 %v834
      %852 = vmatpush.bf16.msra.mxu0 %v792
      %853 = vmatmul.bf16.gmra.mxu0 %v828
      %v854 = vpop.f32.mrf.mxu0
      %v855 = vadd.f32 %v807, %v854
      %v856 = vpop.f32.mrf.mxu0
      %v857 = vadd.f32 %v812, %v856
      %858 = vmatmul.bf16.gmra.mxu0 %v831
      %v859 = vpop.f32.mrf.mxu0
      %v860 = vadd.f32 %v817, %v859
      %v861 = vpop.f32.mrf.mxu0
      %862 = vdwg.mxu0
      %863 = vmatpush.bf16.msra.mxu0 0
      %864 = vmatpush.bf16.msra.mxu0 0
      %865 = vmatpush.bf16.msra.mxu0 0
      %866 = vmatpush.bf16.msra.mxu0 0
      %867 = vmatpush.bf16.msra.mxu0 0
      %868 = vmatpush.bf16.msra.mxu0 0
      %869 = vmatpush.bf16.msra.mxu0 %v837
      %870 = vmatpush.bf16.msra.mxu0 %v793
      %871 = vmatmul.bf16.gmra.mxu0 %v828
      %v872 = vpop.f32.mrf.mxu0
      %v873 = vadd.f32 %v807, %v872
      %v874 = vpop.f32.mrf.mxu0
      %v875 = vadd.f32 %v812, %v874
      %876 = vmatmul.bf16.gmra.mxu0 %v831
      %v877 = vpop.f32.mrf.mxu0
      %v878 = vadd.f32 %v817, %v877
      %v879 = vpop.f32.mrf.mxu0
      %880 = vdwg.mxu0
      %881 = vmatpush.bf16.msra.mxu0 0
      %882 = vmatpush.bf16.msra.mxu0 0
      %883 = vmatpush.bf16.msra.mxu0 0
      %884 = vmatpush.bf16.msra.mxu0 0
      %885 = vmatpush.bf16.msra.mxu0 0
      %886 = vmatpush.bf16.msra.mxu0 0
      %887 = vmatpush.bf16.msra.mxu0 %v840
      %888 = vmatpush.bf16.msra.mxu0 %v794
      %889 = vmatmul.bf16.gmra.mxu0 %v828
      %v890 = vpop.f32.mrf.mxu0
      %v891 = vadd.f32 %v807, %v890
      %v892 = vpop.f32.mrf.mxu0
      %v893 = vadd.f32 %v812, %v892
      %894 = vmatmul.bf16.gmra.mxu0 %v831
      %v895 = vpop.f32.mrf.mxu0
      %v896 = vadd.f32 %v817, %v895
      %v897 = vpop.f32.mrf.mxu0
      %898 = vdwg.mxu0
      %899 = vmatpush.bf16.msra.mxu0 0
      %900 = vmatpush.bf16.msra.mxu0 0
      %901 = vmatpush.bf16.msra.mxu0 0
      %902 = vmatpush.bf16.msra.mxu0 0
      %903 = vmatpush.bf16.msra.mxu0 0
      %904 = vmatpush.bf16.msra.mxu0 0
      %905 = vmatpush.bf16.msra.mxu0 %v843
      %906 = vmatpush.bf16.msra.mxu0 %v795
      %907 = vmatmul.bf16.gmra.mxu0 %v828
      %v908 = vpop.f32.mrf.mxu0
      %v909 = vadd.f32 %v807, %v908
      %v910 = vpop.f32.mrf.mxu0
      %v911 = vadd.f32 %v812, %v910
      %912 = vmatmul.bf16.gmra.mxu0 %v831
      %v913 = vpop.f32.mrf.mxu0
      %v914 = vadd.f32 %v817, %v913
      %v915 = vpop.f32.mrf.mxu0
      %916 = vdwg.mxu0
      %v917 = vmul.f32 %v855, 0.5
      %v918 = vmul.f32 %v873, 0.5
      %v919 = vmul.f32 %v891, 0.5
      %v920 = vmul.f32 %v909, 0.5
      %v921 = vmul.f32 %v857, 0.5
      %v922 = vmul.f32 %v875, 0.5
      %v923 = vmul.f32 %v893, 0.5
      %v924 = vmul.f32 %v911, 0.5
      %v925 = vmul.f32 %v860, 0.5
      %v926 = vmul.f32 %v878, 0.5
      %v927 = vmul.f32 %v896, 0.5
      %v928 = vmul.f32 %v914, 0.5
      %v929 = vtanh.pop %v917
      %v930 = vtanh.pop %v918
      %v931 = vtanh.pop %v919
      %v932 = vtanh.pop %v920
      %v933 = vtanh.pop %v921
      %v934 = vtanh.pop %v922
      %v935 = vtanh.pop %v923
      %v936 = vtanh.pop %v924
      %v937 = vtanh.pop %v925
      %v938 = vtanh.pop %v926
      %v939 = vtanh.pop %v927
      %v940 = vtanh.pop %v928
      %v941 = vmul.f32 %v929, 0.5
      %v942 = vmul.f32 %v930, 0.5
      %v943 = vmul.f32 %v931, 0.5
      %v944 = vmul.f32 %v932, 0.5
      %v945 = vmul.f32 %v933, 0.5
      %v946 = vmul.f32 %v934, 0.5
      %v947 = vmul.f32 %v935, 0.5
      %v948 = vmul.f32 %v936, 0.5
      %v949 = vmul.f32 %v937, 0.5
      %v950 = vmul.f32 %v938, 0.5
      %v951 = vmul.f32 %v939, 0.5
      %v952 = vmul.f32 %v940, 0.5
      %v953 = vadd.f32 %v941, 0.5
      %v954 = vadd.f32 %v942, 0.5
      %v955 = vadd.f32 %v943, 0.5
      %v956 = vadd.f32 %v944, 0.5
      %v957 = vadd.f32 %v945, 0.5
      %v958 = vadd.f32 %v946, 0.5
      %v959 = vadd.f32 %v947, 0.5
      %v960 = vadd.f32 %v948, 0.5
      %v961 = vadd.f32 %v949, 0.5
      %v962 = vadd.f32 %v950, 0.5
      %v963 = vadd.f32 %v951, 0.5
      %v964 = vadd.f32 %v952, 0.5
      %v965 = vmul.f32 %v855, %v953
      %v966 = vmul.f32 %v873, %v954
      %v967 = vmul.f32 %v891, %v955
      %v968 = vmul.f32 %v909, %v956
      %v969 = vmul.f32 %v857, %v957
      %v970 = vmul.f32 %v875, %v958
      %v971 = vmul.f32 %v893, %v959
      %v972 = vmul.f32 %v911, %v960
      %v973 = vmul.f32 %v860, %v961
      %v974 = vmul.f32 %v878, %v962
      %v975 = vmul.f32 %v896, %v963
      %v976 = vmul.f32 %v914, %v964
      %s977 = scalar_lea.vmem %s1, 64
      %v978 = vld [vmem:[%s977] sm:$0xf]
      %v979 = vld [vmem:[%s977 + $0x4] sm:$0xf]
      %v980 = vld [vmem:[%s977 + $0x8] sm:$0xf]
      %v981 = vpack.c.bf16 %v969, %v965
      %v982 = vpack.c.bf16 %v970, %v966
      %v983 = vpack.c.bf16 %v971, %v967
      %v984 = vpack.c.bf16 %v972, %v968
      %v985 = vpack.c.bf16 %v973, %v973
      %v986 = vpack.c.bf16 %v974, %v974
      %v987 = vpack.c.bf16 %v975, %v975
      %v988 = vpack.c.bf16 %v976, %v976
      %s989 = scalar_lea.vmem %s2, 128
      %v990 = vld [vmem:[%s989] sm:$0xff]
      %v991 = vld [vmem:[%s989 + $0x8] sm:$0xff]
      %v992 = vld [vmem:[%s989 + $0x10] sm:$0xff]
      %994 = vset.pattern.permute.xlu0 0
      %995 = vperm.xlu0 %994, %v990
      %v996 = vpop.permute.xlu0 %995
      %999 = vset.pattern.permute.xlu0 0
      %1000 = vperm.xlu0 %999, %v991
      %v1001 = vpop.permute.xlu0 %1000
      %1004 = vset.pattern.permute.xlu0 0
      %1005 = vperm.xlu0 %1004, %v992
      %v1006 = vpop.permute.xlu0 %1005
      %v1011 = vunpack.c.l.b16 %v978
      %v1012 = vunpack.c.l.b16 %v979
      %v1013 = vunpack.c.l.b16 %v980
      %v1014 = vpack.c.b16 %v1012, %v1011
      %v1015 = vpack.c.b16 %v1013, %v1013
      %v1017 = vsel %vm447, %v1014, 0
      %v1020 = vsel %vm447, %v1015, 0
      %v1023 = vsel %vm454, %v985, 0
      %v1026 = vsel %vm454, %v986, 0
      %v1029 = vsel %vm454, %v987, 0
      %v1032 = vsel %vm454, %v988, 0
      %1034 = vmatpush.bf16.msra.mxu0 0
      %1035 = vmatpush.bf16.msra.mxu0 0
      %1036 = vmatpush.bf16.msra.mxu0 0
      %1037 = vmatpush.bf16.msra.mxu0 0
      %1038 = vmatpush.bf16.msra.mxu0 0
      %1039 = vmatpush.bf16.msra.mxu0 0
      %1040 = vmatpush.bf16.msra.mxu0 %v1023
      %1041 = vmatpush.bf16.msra.mxu0 %v981
      %1042 = vmatmul.bf16.gmra.mxu0 %v1017
      %v1043 = vpop.f32.mrf.mxu0
      %v1044 = vadd.f32 %v996, %v1043
      %v1045 = vpop.f32.mrf.mxu0
      %v1046 = vadd.f32 %v1001, %v1045
      %1047 = vmatmul.bf16.gmra.mxu0 %v1020
      %v1048 = vpop.f32.mrf.mxu0
      %v1049 = vadd.f32 %v1006, %v1048
      %v1050 = vpop.f32.mrf.mxu0
      %1051 = vdwg.mxu0
      %1052 = vmatpush.bf16.msra.mxu0 0
      %1053 = vmatpush.bf16.msra.mxu0 0
      %1054 = vmatpush.bf16.msra.mxu0 0
      %1055 = vmatpush.bf16.msra.mxu0 0
      %1056 = vmatpush.bf16.msra.mxu0 0
      %1057 = vmatpush.bf16.msra.mxu0 0
      %1058 = vmatpush.bf16.msra.mxu0 %v1026
      %1059 = vmatpush.bf16.msra.mxu0 %v982
      %1060 = vmatmul.bf16.gmra.mxu0 %v1017
      %v1061 = vpop.f32.mrf.mxu0
      %v1062 = vadd.f32 %v996, %v1061
      %v1063 = vpop.f32.mrf.mxu0
      %v1064 = vadd.f32 %v1001, %v1063
      %1065 = vmatmul.bf16.gmra.mxu0 %v1020
      %v1066 = vpop.f32.mrf.mxu0
      %v1067 = vadd.f32 %v1006, %v1066
      %v1068 = vpop.f32.mrf.mxu0
      %1069 = vdwg.mxu0
      %1070 = vmatpush.bf16.msra.mxu0 0
      %1071 = vmatpush.bf16.msra.mxu0 0
      %1072 = vmatpush.bf16.msra.mxu0 0
      %1073 = vmatpush.bf16.msra.mxu0 0
      %1074 = vmatpush.bf16.msra.mxu0 0
      %1075 = vmatpush.bf16.msra.mxu0 0
      %1076 = vmatpush.bf16.msra.mxu0 %v1029
      %1077 = vmatpush.bf16.msra.mxu0 %v983
      %1078 = vmatmul.bf16.gmra.mxu0 %v1017
      %v1079 = vpop.f32.mrf.mxu0
      %v1080 = vadd.f32 %v996, %v1079
      %v1081 = vpop.f32.mrf.mxu0
      %v1082 = vadd.f32 %v1001, %v1081
      %1083 = vmatmul.bf16.gmra.mxu0 %v1020
      %v1084 = vpop.f32.mrf.mxu0
      %v1085 = vadd.f32 %v1006, %v1084
      %v1086 = vpop.f32.mrf.mxu0
      %1087 = vdwg.mxu0
      %1088 = vmatpush.bf16.msra.mxu0 0
      %1089 = vmatpush.bf16.msra.mxu0 0
      %1090 = vmatpush.bf16.msra.mxu0 0
      %1091 = vmatpush.bf16.msra.mxu0 0
      %1092 = vmatpush.bf16.msra.mxu0 0
      %1093 = vmatpush.bf16.msra.mxu0 0
      %1094 = vmatpush.bf16.msra.mxu0 %v1032
      %1095 = vmatpush.bf16.msra.mxu0 %v984
      %1096 = vmatmul.bf16.gmra.mxu0 %v1017
      %v1097 = vpop.f32.mrf.mxu0
      %v1098 = vadd.f32 %v996, %v1097
      %v1099 = vpop.f32.mrf.mxu0
      %v1100 = vadd.f32 %v1001, %v1099
      %1101 = vmatmul.bf16.gmra.mxu0 %v1020
      %v1102 = vpop.f32.mrf.mxu0
      %v1103 = vadd.f32 %v1006, %v1102
      %v1104 = vpop.f32.mrf.mxu0
      %1105 = vdwg.mxu0
      %v1106 = vmul.f32 %v1044, 0.5
      %v1107 = vmul.f32 %v1062, 0.5
      %v1108 = vmul.f32 %v1080, 0.5
      %v1109 = vmul.f32 %v1098, 0.5
      %v1110 = vmul.f32 %v1046, 0.5
      %v1111 = vmul.f32 %v1064, 0.5
      %v1112 = vmul.f32 %v1082, 0.5
      %v1113 = vmul.f32 %v1100, 0.5
      %v1114 = vmul.f32 %v1049, 0.5
      %v1115 = vmul.f32 %v1067, 0.5
      %v1116 = vmul.f32 %v1085, 0.5
      %v1117 = vmul.f32 %v1103, 0.5
      %v1118 = vtanh.pop %v1106
      %v1119 = vtanh.pop %v1107
      %v1120 = vtanh.pop %v1108
      %v1121 = vtanh.pop %v1109
      %v1122 = vtanh.pop %v1110
      %v1123 = vtanh.pop %v1111
      %v1124 = vtanh.pop %v1112
      %v1125 = vtanh.pop %v1113
      %v1126 = vtanh.pop %v1114
      %v1127 = vtanh.pop %v1115
      %v1128 = vtanh.pop %v1116
      %v1129 = vtanh.pop %v1117
      %v1130 = vmul.f32 %v1118, 0.5
      %v1131 = vmul.f32 %v1119, 0.5
      %v1132 = vmul.f32 %v1120, 0.5
      %v1133 = vmul.f32 %v1121, 0.5
      %v1134 = vmul.f32 %v1122, 0.5
      %v1135 = vmul.f32 %v1123, 0.5
      %v1136 = vmul.f32 %v1124, 0.5
      %v1137 = vmul.f32 %v1125, 0.5
      %v1138 = vmul.f32 %v1126, 0.5
      %v1139 = vmul.f32 %v1127, 0.5
      %v1140 = vmul.f32 %v1128, 0.5
      %v1141 = vmul.f32 %v1129, 0.5
      %v1142 = vadd.f32 %v1130, 0.5
      %v1143 = vadd.f32 %v1131, 0.5
      %v1144 = vadd.f32 %v1132, 0.5
      %v1145 = vadd.f32 %v1133, 0.5
      %v1146 = vadd.f32 %v1134, 0.5
      %v1147 = vadd.f32 %v1135, 0.5
      %v1148 = vadd.f32 %v1136, 0.5
      %v1149 = vadd.f32 %v1137, 0.5
      %v1150 = vadd.f32 %v1138, 0.5
      %v1151 = vadd.f32 %v1139, 0.5
      %v1152 = vadd.f32 %v1140, 0.5
      %v1153 = vadd.f32 %v1141, 0.5
      %v1154 = vmul.f32 %v1044, %v1142
      %v1155 = vmul.f32 %v1062, %v1143
      %v1156 = vmul.f32 %v1080, %v1144
      %v1157 = vmul.f32 %v1098, %v1145
      %v1158 = vmul.f32 %v1046, %v1146
      %v1159 = vmul.f32 %v1064, %v1147
      %v1160 = vmul.f32 %v1082, %v1148
      %v1161 = vmul.f32 %v1100, %v1149
      %v1162 = vmul.f32 %v1049, %v1150
      %v1163 = vmul.f32 %v1067, %v1151
      %v1164 = vmul.f32 %v1085, %v1152
      %v1165 = vmul.f32 %v1103, %v1153
      %s1166 = scalar_lea.vmem %s1, 80
      %v1167 = vld [vmem:[%s1166] sm:$0xf]
      %v1168 = vld [vmem:[%s1166 + $0x4] sm:$0xf]
      %v1169 = vld [vmem:[%s1166 + $0x8] sm:$0xf]
      %v1170 = vpack.c.bf16 %v1158, %v1154
      %v1171 = vpack.c.bf16 %v1159, %v1155
      %v1172 = vpack.c.bf16 %v1160, %v1156
      %v1173 = vpack.c.bf16 %v1161, %v1157
      %v1174 = vpack.c.bf16 %v1162, %v1162
      %v1175 = vpack.c.bf16 %v1163, %v1163
      %v1176 = vpack.c.bf16 %v1164, %v1164
      %v1177 = vpack.c.bf16 %v1165, %v1165
      %s1178 = scalar_lea.vmem %s2, 160
      %v1179 = vld [vmem:[%s1178] sm:$0xff]
      %v1180 = vld [vmem:[%s1178 + $0x8] sm:$0xff]
      %v1181 = vld [vmem:[%s1178 + $0x10] sm:$0xff]
      %1183 = vset.pattern.permute.xlu0 0
      %1184 = vperm.xlu0 %1183, %v1179
      %v1185 = vpop.permute.xlu0 %1184
      %1188 = vset.pattern.permute.xlu0 0
      %1189 = vperm.xlu0 %1188, %v1180
      %v1190 = vpop.permute.xlu0 %1189
      %1193 = vset.pattern.permute.xlu0 0
      %1194 = vperm.xlu0 %1193, %v1181
      %v1195 = vpop.permute.xlu0 %1194
      %v1200 = vunpack.c.l.b16 %v1167
      %v1201 = vunpack.c.l.b16 %v1168
      %v1202 = vunpack.c.l.b16 %v1169
      %v1203 = vpack.c.b16 %v1201, %v1200
      %v1204 = vpack.c.b16 %v1202, %v1202
      %v1206 = vsel %vm447, %v1203, 0
      %v1209 = vsel %vm447, %v1204, 0
      %v1212 = vsel %vm454, %v1174, 0
      %v1215 = vsel %vm454, %v1175, 0
      %v1218 = vsel %vm454, %v1176, 0
      %v1221 = vsel %vm454, %v1177, 0
      %1223 = vmatpush.bf16.msra.mxu0 0
      %1224 = vmatpush.bf16.msra.mxu0 0
      %1225 = vmatpush.bf16.msra.mxu0 0
      %1226 = vmatpush.bf16.msra.mxu0 0
      %1227 = vmatpush.bf16.msra.mxu0 0
      %1228 = vmatpush.bf16.msra.mxu0 0
      %1229 = vmatpush.bf16.msra.mxu0 %v1212
      %1230 = vmatpush.bf16.msra.mxu0 %v1170
      %1231 = vmatmul.bf16.gmra.mxu0 %v1206
      %v1232 = vpop.f32.mrf.mxu0
      %v1233 = vadd.f32 %v1185, %v1232
      %v1234 = vpop.f32.mrf.mxu0
      %v1235 = vadd.f32 %v1190, %v1234
      %1236 = vmatmul.bf16.gmra.mxu0 %v1209
      %v1237 = vpop.f32.mrf.mxu0
      %v1238 = vadd.f32 %v1195, %v1237
      %v1239 = vpop.f32.mrf.mxu0
      %1240 = vdwg.mxu0
      %1241 = vmatpush.bf16.msra.mxu0 0
      %1242 = vmatpush.bf16.msra.mxu0 0
      %1243 = vmatpush.bf16.msra.mxu0 0
      %1244 = vmatpush.bf16.msra.mxu0 0
      %1245 = vmatpush.bf16.msra.mxu0 0
      %1246 = vmatpush.bf16.msra.mxu0 0
      %1247 = vmatpush.bf16.msra.mxu0 %v1215
      %1248 = vmatpush.bf16.msra.mxu0 %v1171
      %1249 = vmatmul.bf16.gmra.mxu0 %v1206
      %v1250 = vpop.f32.mrf.mxu0
      %v1251 = vadd.f32 %v1185, %v1250
      %v1252 = vpop.f32.mrf.mxu0
      %v1253 = vadd.f32 %v1190, %v1252
      %1254 = vmatmul.bf16.gmra.mxu0 %v1209
      %v1255 = vpop.f32.mrf.mxu0
      %v1256 = vadd.f32 %v1195, %v1255
      %v1257 = vpop.f32.mrf.mxu0
      %1258 = vdwg.mxu0
      %1259 = vmatpush.bf16.msra.mxu0 0
      %1260 = vmatpush.bf16.msra.mxu0 0
      %1261 = vmatpush.bf16.msra.mxu0 0
      %1262 = vmatpush.bf16.msra.mxu0 0
      %1263 = vmatpush.bf16.msra.mxu0 0
      %1264 = vmatpush.bf16.msra.mxu0 0
      %1265 = vmatpush.bf16.msra.mxu0 %v1218
      %1266 = vmatpush.bf16.msra.mxu0 %v1172
      %1267 = vmatmul.bf16.gmra.mxu0 %v1206
      %v1268 = vpop.f32.mrf.mxu0
      %v1269 = vadd.f32 %v1185, %v1268
      %v1270 = vpop.f32.mrf.mxu0
      %v1271 = vadd.f32 %v1190, %v1270
      %1272 = vmatmul.bf16.gmra.mxu0 %v1209
      %v1273 = vpop.f32.mrf.mxu0
      %v1274 = vadd.f32 %v1195, %v1273
      %v1275 = vpop.f32.mrf.mxu0
      %1276 = vdwg.mxu0
      %1277 = vmatpush.bf16.msra.mxu0 0
      %1278 = vmatpush.bf16.msra.mxu0 0
      %1279 = vmatpush.bf16.msra.mxu0 0
      %1280 = vmatpush.bf16.msra.mxu0 0
      %1281 = vmatpush.bf16.msra.mxu0 0
      %1282 = vmatpush.bf16.msra.mxu0 0
      %1283 = vmatpush.bf16.msra.mxu0 %v1221
      %1284 = vmatpush.bf16.msra.mxu0 %v1173
      %1285 = vmatmul.bf16.gmra.mxu0 %v1206
      %v1286 = vpop.f32.mrf.mxu0
      %v1287 = vadd.f32 %v1185, %v1286
      %v1288 = vpop.f32.mrf.mxu0
      %v1289 = vadd.f32 %v1190, %v1288
      %1290 = vmatmul.bf16.gmra.mxu0 %v1209
      %v1291 = vpop.f32.mrf.mxu0
      %v1292 = vadd.f32 %v1195, %v1291
      %v1293 = vpop.f32.mrf.mxu0
      %1294 = vdwg.mxu0
      %v1295 = vmul.f32 %v1233, 0.5
      %v1296 = vmul.f32 %v1251, 0.5
      %v1297 = vmul.f32 %v1269, 0.5
      %v1298 = vmul.f32 %v1287, 0.5
      %v1299 = vmul.f32 %v1235, 0.5
      %v1300 = vmul.f32 %v1253, 0.5
      %v1301 = vmul.f32 %v1271, 0.5
      %v1302 = vmul.f32 %v1289, 0.5
      %v1303 = vmul.f32 %v1238, 0.5
      %v1304 = vmul.f32 %v1256, 0.5
      %v1305 = vmul.f32 %v1274, 0.5
      %v1306 = vmul.f32 %v1292, 0.5
      %v1307 = vtanh.pop %v1295
      %v1308 = vtanh.pop %v1296
      %v1309 = vtanh.pop %v1297
      %v1310 = vtanh.pop %v1298
      %v1311 = vtanh.pop %v1299
      %v1312 = vtanh.pop %v1300
      %v1313 = vtanh.pop %v1301
      %v1314 = vtanh.pop %v1302
      %v1315 = vtanh.pop %v1303
      %v1316 = vtanh.pop %v1304
      %v1317 = vtanh.pop %v1305
      %v1318 = vtanh.pop %v1306
      %v1319 = vmul.f32 %v1307, 0.5
      %v1320 = vmul.f32 %v1308, 0.5
      %v1321 = vmul.f32 %v1309, 0.5
      %v1322 = vmul.f32 %v1310, 0.5
      %v1323 = vmul.f32 %v1311, 0.5
      %v1324 = vmul.f32 %v1312, 0.5
      %v1325 = vmul.f32 %v1313, 0.5
      %v1326 = vmul.f32 %v1314, 0.5
      %v1327 = vmul.f32 %v1315, 0.5
      %v1328 = vmul.f32 %v1316, 0.5
      %v1329 = vmul.f32 %v1317, 0.5
      %v1330 = vmul.f32 %v1318, 0.5
      %v1331 = vadd.f32 %v1319, 0.5
      %v1332 = vadd.f32 %v1320, 0.5
      %v1333 = vadd.f32 %v1321, 0.5
      %v1334 = vadd.f32 %v1322, 0.5
      %v1335 = vadd.f32 %v1323, 0.5
      %v1336 = vadd.f32 %v1324, 0.5
      %v1337 = vadd.f32 %v1325, 0.5
      %v1338 = vadd.f32 %v1326, 0.5
      %v1339 = vadd.f32 %v1327, 0.5
      %v1340 = vadd.f32 %v1328, 0.5
      %v1341 = vadd.f32 %v1329, 0.5
      %v1342 = vadd.f32 %v1330, 0.5
      %v1343 = vmul.f32 %v1233, %v1331
      %v1344 = vmul.f32 %v1251, %v1332
      %v1345 = vmul.f32 %v1269, %v1333
      %v1346 = vmul.f32 %v1287, %v1334
      %v1347 = vmul.f32 %v1235, %v1335
      %v1348 = vmul.f32 %v1253, %v1336
      %v1349 = vmul.f32 %v1271, %v1337
      %v1350 = vmul.f32 %v1289, %v1338
      %v1351 = vmul.f32 %v1238, %v1339
      %v1352 = vmul.f32 %v1256, %v1340
      %v1353 = vmul.f32 %v1274, %v1341
      %v1354 = vmul.f32 %v1292, %v1342
      %s1355 = scalar_lea.vmem %s1, 96
      %v1356 = vld [vmem:[%s1355] sm:$0xf]
      %v1357 = vld [vmem:[%s1355 + $0x4] sm:$0xf]
      %v1358 = vld [vmem:[%s1355 + $0x8] sm:$0xf]
      %v1359 = vpack.c.bf16 %v1347, %v1343
      %v1360 = vpack.c.bf16 %v1348, %v1344
      %v1361 = vpack.c.bf16 %v1349, %v1345
      %v1362 = vpack.c.bf16 %v1350, %v1346
      %v1363 = vpack.c.bf16 %v1351, %v1351
      %v1364 = vpack.c.bf16 %v1352, %v1352
      %v1365 = vpack.c.bf16 %v1353, %v1353
      %v1366 = vpack.c.bf16 %v1354, %v1354
      %s1367 = scalar_lea.vmem %s2, 192
      %v1368 = vld [vmem:[%s1367] sm:$0xff]
      %v1369 = vld [vmem:[%s1367 + $0x8] sm:$0xff]
      %v1370 = vld [vmem:[%s1367 + $0x10] sm:$0xff]
      %1372 = vset.pattern.permute.xlu0 0
      %1373 = vperm.xlu0 %1372, %v1368
      %v1374 = vpop.permute.xlu0 %1373
      %1377 = vset.pattern.permute.xlu0 0
      %1378 = vperm.xlu0 %1377, %v1369
      %v1379 = vpop.permute.xlu0 %1378
      %1382 = vset.pattern.permute.xlu0 0
      %1383 = vperm.xlu0 %1382, %v1370
      %v1384 = vpop.permute.xlu0 %1383
      %v1389 = vunpack.c.l.b16 %v1356
      %v1390 = vunpack.c.l.b16 %v1357
      %v1391 = vunpack.c.l.b16 %v1358
      %v1392 = vpack.c.b16 %v1390, %v1389
      %v1393 = vpack.c.b16 %v1391, %v1391
      %v1395 = vsel %vm447, %v1392, 0
      %v1398 = vsel %vm447, %v1393, 0
      %v1401 = vsel %vm454, %v1363, 0
      %v1404 = vsel %vm454, %v1364, 0
      %v1407 = vsel %vm454, %v1365, 0
      %v1410 = vsel %vm454, %v1366, 0
      %1412 = vmatpush.bf16.msra.mxu0 0
      %1413 = vmatpush.bf16.msra.mxu0 0
      %1414 = vmatpush.bf16.msra.mxu0 0
      %1415 = vmatpush.bf16.msra.mxu0 0
      %1416 = vmatpush.bf16.msra.mxu0 0
      %1417 = vmatpush.bf16.msra.mxu0 0
      %1418 = vmatpush.bf16.msra.mxu0 %v1401
      %1419 = vmatpush.bf16.msra.mxu0 %v1359
      %1420 = vmatmul.bf16.gmra.mxu0 %v1395
      %v1421 = vpop.f32.mrf.mxu0
      %v1422 = vadd.f32 %v1374, %v1421
      %v1423 = vpop.f32.mrf.mxu0
      %v1424 = vadd.f32 %v1379, %v1423
      %1425 = vmatmul.bf16.gmra.mxu0 %v1398
      %v1426 = vpop.f32.mrf.mxu0
      %v1427 = vadd.f32 %v1384, %v1426
      %v1428 = vpop.f32.mrf.mxu0
      %1429 = vdwg.mxu0
      %1430 = vmatpush.bf16.msra.mxu0 0
      %1431 = vmatpush.bf16.msra.mxu0 0
      %1432 = vmatpush.bf16.msra.mxu0 0
      %1433 = vmatpush.bf16.msra.mxu0 0
      %1434 = vmatpush.bf16.msra.mxu0 0
      %1435 = vmatpush.bf16.msra.mxu0 0
      %1436 = vmatpush.bf16.msra.mxu0 %v1404
      %1437 = vmatpush.bf16.msra.mxu0 %v1360
      %1438 = vmatmul.bf16.gmra.mxu0 %v1395
      %v1439 = vpop.f32.mrf.mxu0
      %v1440 = vadd.f32 %v1374, %v1439
      %v1441 = vpop.f32.mrf.mxu0
      %v1442 = vadd.f32 %v1379, %v1441
      %1443 = vmatmul.bf16.gmra.mxu0 %v1398
      %v1444 = vpop.f32.mrf.mxu0
      %v1445 = vadd.f32 %v1384, %v1444
      %v1446 = vpop.f32.mrf.mxu0
      %1447 = vdwg.mxu0
      %1448 = vmatpush.bf16.msra.mxu0 0
      %1449 = vmatpush.bf16.msra.mxu0 0
      %1450 = vmatpush.bf16.msra.mxu0 0
      %1451 = vmatpush.bf16.msra.mxu0 0
      %1452 = vmatpush.bf16.msra.mxu0 0
      %1453 = vmatpush.bf16.msra.mxu0 0
      %1454 = vmatpush.bf16.msra.mxu0 %v1407
      %1455 = vmatpush.bf16.msra.mxu0 %v1361
      %1456 = vmatmul.bf16.gmra.mxu0 %v1395
      %v1457 = vpop.f32.mrf.mxu0
      %v1458 = vadd.f32 %v1374, %v1457
      %v1459 = vpop.f32.mrf.mxu0
      %v1460 = vadd.f32 %v1379, %v1459
      %1461 = vmatmul.bf16.gmra.mxu0 %v1398
      %v1462 = vpop.f32.mrf.mxu0
      %v1463 = vadd.f32 %v1384, %v1462
      %v1464 = vpop.f32.mrf.mxu0
      %1465 = vdwg.mxu0
      %1466 = vmatpush.bf16.msra.mxu0 0
      %1467 = vmatpush.bf16.msra.mxu0 0
      %1468 = vmatpush.bf16.msra.mxu0 0
      %1469 = vmatpush.bf16.msra.mxu0 0
      %1470 = vmatpush.bf16.msra.mxu0 0
      %1471 = vmatpush.bf16.msra.mxu0 0
      %1472 = vmatpush.bf16.msra.mxu0 %v1410
      %1473 = vmatpush.bf16.msra.mxu0 %v1362
      %1474 = vmatmul.bf16.gmra.mxu0 %v1395
      %v1475 = vpop.f32.mrf.mxu0
      %v1476 = vadd.f32 %v1374, %v1475
      %v1477 = vpop.f32.mrf.mxu0
      %v1478 = vadd.f32 %v1379, %v1477
      %1479 = vmatmul.bf16.gmra.mxu0 %v1398
      %v1480 = vpop.f32.mrf.mxu0
      %v1481 = vadd.f32 %v1384, %v1480
      %v1482 = vpop.f32.mrf.mxu0
      %1483 = vdwg.mxu0
      %v1484 = vmul.f32 %v1422, 0.5
      %v1485 = vmul.f32 %v1440, 0.5
      %v1486 = vmul.f32 %v1458, 0.5
      %v1487 = vmul.f32 %v1476, 0.5
      %v1488 = vmul.f32 %v1424, 0.5
      %v1489 = vmul.f32 %v1442, 0.5
      %v1490 = vmul.f32 %v1460, 0.5
      %v1491 = vmul.f32 %v1478, 0.5
      %v1492 = vmul.f32 %v1427, 0.5
      %v1493 = vmul.f32 %v1445, 0.5
      %v1494 = vmul.f32 %v1463, 0.5
      %v1495 = vmul.f32 %v1481, 0.5
      %v1496 = vtanh.pop %v1484
      %v1497 = vtanh.pop %v1485
      %v1498 = vtanh.pop %v1486
      %v1499 = vtanh.pop %v1487
      %v1500 = vtanh.pop %v1488
      %v1501 = vtanh.pop %v1489
      %v1502 = vtanh.pop %v1490
      %v1503 = vtanh.pop %v1491
      %v1504 = vtanh.pop %v1492
      %v1505 = vtanh.pop %v1493
      %v1506 = vtanh.pop %v1494
      %v1507 = vtanh.pop %v1495
      %v1508 = vmul.f32 %v1496, 0.5
      %v1509 = vmul.f32 %v1497, 0.5
      %v1510 = vmul.f32 %v1498, 0.5
      %v1511 = vmul.f32 %v1499, 0.5
      %v1512 = vmul.f32 %v1500, 0.5
      %v1513 = vmul.f32 %v1501, 0.5
      %v1514 = vmul.f32 %v1502, 0.5
      %v1515 = vmul.f32 %v1503, 0.5
      %v1516 = vmul.f32 %v1504, 0.5
      %v1517 = vmul.f32 %v1505, 0.5
      %v1518 = vmul.f32 %v1506, 0.5
      %v1519 = vmul.f32 %v1507, 0.5
      %v1520 = vadd.f32 %v1508, 0.5
      %v1521 = vadd.f32 %v1509, 0.5
      %v1522 = vadd.f32 %v1510, 0.5
      %v1523 = vadd.f32 %v1511, 0.5
      %v1524 = vadd.f32 %v1512, 0.5
      %v1525 = vadd.f32 %v1513, 0.5
      %v1526 = vadd.f32 %v1514, 0.5
      %v1527 = vadd.f32 %v1515, 0.5
      %v1528 = vadd.f32 %v1516, 0.5
      %v1529 = vadd.f32 %v1517, 0.5
      %v1530 = vadd.f32 %v1518, 0.5
      %v1531 = vadd.f32 %v1519, 0.5
      %v1532 = vmul.f32 %v1422, %v1520
      %v1533 = vmul.f32 %v1440, %v1521
      %v1534 = vmul.f32 %v1458, %v1522
      %v1535 = vmul.f32 %v1476, %v1523
      %v1536 = vmul.f32 %v1424, %v1524
      %v1537 = vmul.f32 %v1442, %v1525
      %v1538 = vmul.f32 %v1460, %v1526
      %v1539 = vmul.f32 %v1478, %v1527
      %v1540 = vmul.f32 %v1427, %v1528
      %v1541 = vmul.f32 %v1445, %v1529
      %v1542 = vmul.f32 %v1463, %v1530
      %v1543 = vmul.f32 %v1481, %v1531
      %s1544 = scalar_lea.vmem %s1, 112
      %v1545 = vld [vmem:[%s1544] sm:$0xf]
      %v1546 = vld [vmem:[%s1544 + $0x4] sm:$0xf]
      %v1547 = vld [vmem:[%s1544 + $0x8] sm:$0xf]
      %v1548 = vpack.c.bf16 %v1536, %v1532
      %v1549 = vpack.c.bf16 %v1537, %v1533
      %v1550 = vpack.c.bf16 %v1538, %v1534
      %v1551 = vpack.c.bf16 %v1539, %v1535
      %v1552 = vpack.c.bf16 %v1540, %v1540
      %v1553 = vpack.c.bf16 %v1541, %v1541
      %v1554 = vpack.c.bf16 %v1542, %v1542
      %v1555 = vpack.c.bf16 %v1543, %v1543
      %s1556 = scalar_lea.vmem %s2, 224
      %v1557 = vld [vmem:[%s1556] sm:$0xff]
      %v1558 = vld [vmem:[%s1556 + $0x8] sm:$0xff]
      %v1559 = vld [vmem:[%s1556 + $0x10] sm:$0xff]
      %1561 = vset.pattern.permute.xlu0 0
      %1562 = vperm.xlu0 %1561, %v1557
      %v1563 = vpop.permute.xlu0 %1562
      %1566 = vset.pattern.permute.xlu0 0
      %1567 = vperm.xlu0 %1566, %v1558
      %v1568 = vpop.permute.xlu0 %1567
      %1571 = vset.pattern.permute.xlu0 0
      %1572 = vperm.xlu0 %1571, %v1559
      %v1573 = vpop.permute.xlu0 %1572
      %v1578 = vunpack.c.l.b16 %v1545
      %v1579 = vunpack.c.l.b16 %v1546
      %v1580 = vunpack.c.l.b16 %v1547
      %v1581 = vpack.c.b16 %v1579, %v1578
      %v1582 = vpack.c.b16 %v1580, %v1580
      %v1584 = vsel %vm447, %v1581, 0
      %v1587 = vsel %vm447, %v1582, 0
      %v1590 = vsel %vm454, %v1552, 0
      %v1593 = vsel %vm454, %v1553, 0
      %v1596 = vsel %vm454, %v1554, 0
      %v1599 = vsel %vm454, %v1555, 0
      %1601 = vmatpush.bf16.msra.mxu0 0
      %1602 = vmatpush.bf16.msra.mxu0 0
      %1603 = vmatpush.bf16.msra.mxu0 0
      %1604 = vmatpush.bf16.msra.mxu0 0
      %1605 = vmatpush.bf16.msra.mxu0 0
      %1606 = vmatpush.bf16.msra.mxu0 0
      %1607 = vmatpush.bf16.msra.mxu0 %v1590
      %1608 = vmatpush.bf16.msra.mxu0 %v1548
      %1609 = vmatmul.bf16.gmra.mxu0 %v1584
      %v1610 = vpop.f32.mrf.mxu0
      %v1611 = vadd.f32 %v1563, %v1610
      %v1612 = vpop.f32.mrf.mxu0
      %v1613 = vadd.f32 %v1568, %v1612
      %1614 = vmatmul.bf16.gmra.mxu0 %v1587
      %v1615 = vpop.f32.mrf.mxu0
      %v1616 = vadd.f32 %v1573, %v1615
      %v1617 = vpop.f32.mrf.mxu0
      %1618 = vdwg.mxu0
      %1619 = vmatpush.bf16.msra.mxu0 0
      %1620 = vmatpush.bf16.msra.mxu0 0
      %1621 = vmatpush.bf16.msra.mxu0 0
      %1622 = vmatpush.bf16.msra.mxu0 0
      %1623 = vmatpush.bf16.msra.mxu0 0
      %1624 = vmatpush.bf16.msra.mxu0 0
      %1625 = vmatpush.bf16.msra.mxu0 %v1593
      %1626 = vmatpush.bf16.msra.mxu0 %v1549
      %1627 = vmatmul.bf16.gmra.mxu0 %v1584
      %v1628 = vpop.f32.mrf.mxu0
      %v1629 = vadd.f32 %v1563, %v1628
      %v1630 = vpop.f32.mrf.mxu0
      %v1631 = vadd.f32 %v1568, %v1630
      %1632 = vmatmul.bf16.gmra.mxu0 %v1587
      %v1633 = vpop.f32.mrf.mxu0
      %v1634 = vadd.f32 %v1573, %v1633
      %v1635 = vpop.f32.mrf.mxu0
      %1636 = vdwg.mxu0
      %1637 = vmatpush.bf16.msra.mxu0 0
      %1638 = vmatpush.bf16.msra.mxu0 0
      %1639 = vmatpush.bf16.msra.mxu0 0
      %1640 = vmatpush.bf16.msra.mxu0 0
      %1641 = vmatpush.bf16.msra.mxu0 0
      %1642 = vmatpush.bf16.msra.mxu0 0
      %1643 = vmatpush.bf16.msra.mxu0 %v1596
      %1644 = vmatpush.bf16.msra.mxu0 %v1550
      %1645 = vmatmul.bf16.gmra.mxu0 %v1584
      %v1646 = vpop.f32.mrf.mxu0
      %v1647 = vadd.f32 %v1563, %v1646
      %v1648 = vpop.f32.mrf.mxu0
      %v1649 = vadd.f32 %v1568, %v1648
      %1650 = vmatmul.bf16.gmra.mxu0 %v1587
      %v1651 = vpop.f32.mrf.mxu0
      %v1652 = vadd.f32 %v1573, %v1651
      %v1653 = vpop.f32.mrf.mxu0
      %1654 = vdwg.mxu0
      %1655 = vmatpush.bf16.msra.mxu0 0
      %1656 = vmatpush.bf16.msra.mxu0 0
      %1657 = vmatpush.bf16.msra.mxu0 0
      %1658 = vmatpush.bf16.msra.mxu0 0
      %1659 = vmatpush.bf16.msra.mxu0 0
      %1660 = vmatpush.bf16.msra.mxu0 0
      %1661 = vmatpush.bf16.msra.mxu0 %v1599
      %1662 = vmatpush.bf16.msra.mxu0 %v1551
      %1663 = vmatmul.bf16.gmra.mxu0 %v1584
      %v1664 = vpop.f32.mrf.mxu0
      %v1665 = vadd.f32 %v1563, %v1664
      %v1666 = vpop.f32.mrf.mxu0
      %v1667 = vadd.f32 %v1568, %v1666
      %1668 = vmatmul.bf16.gmra.mxu0 %v1587
      %v1669 = vpop.f32.mrf.mxu0
      %v1670 = vadd.f32 %v1573, %v1669
      %v1671 = vpop.f32.mrf.mxu0
      %1672 = vdwg.mxu0
      %v1673 = vmul.f32 %v1611, 0.5
      %v1674 = vmul.f32 %v1629, 0.5
      %v1675 = vmul.f32 %v1647, 0.5
      %v1676 = vmul.f32 %v1665, 0.5
      %v1677 = vmul.f32 %v1613, 0.5
      %v1678 = vmul.f32 %v1631, 0.5
      %v1679 = vmul.f32 %v1649, 0.5
      %v1680 = vmul.f32 %v1667, 0.5
      %v1681 = vmul.f32 %v1616, 0.5
      %v1682 = vmul.f32 %v1634, 0.5
      %v1683 = vmul.f32 %v1652, 0.5
      %v1684 = vmul.f32 %v1670, 0.5
      %v1685 = vtanh.pop %v1673
      %v1686 = vtanh.pop %v1674
      %v1687 = vtanh.pop %v1675
      %v1688 = vtanh.pop %v1676
      %v1689 = vtanh.pop %v1677
      %v1690 = vtanh.pop %v1678
      %v1691 = vtanh.pop %v1679
      %v1692 = vtanh.pop %v1680
      %v1693 = vtanh.pop %v1681
      %v1694 = vtanh.pop %v1682
      %v1695 = vtanh.pop %v1683
      %v1696 = vtanh.pop %v1684
      %v1697 = vmul.f32 %v1685, 0.5
      %v1698 = vmul.f32 %v1686, 0.5
      %v1699 = vmul.f32 %v1687, 0.5
      %v1700 = vmul.f32 %v1688, 0.5
      %v1701 = vmul.f32 %v1689, 0.5
      %v1702 = vmul.f32 %v1690, 0.5
      %v1703 = vmul.f32 %v1691, 0.5
      %v1704 = vmul.f32 %v1692, 0.5
      %v1705 = vmul.f32 %v1693, 0.5
      %v1706 = vmul.f32 %v1694, 0.5
      %v1707 = vmul.f32 %v1695, 0.5
      %v1708 = vmul.f32 %v1696, 0.5
      %v1709 = vadd.f32 %v1697, 0.5
      %v1710 = vadd.f32 %v1698, 0.5
      %v1711 = vadd.f32 %v1699, 0.5
      %v1712 = vadd.f32 %v1700, 0.5
      %v1713 = vadd.f32 %v1701, 0.5
      %v1714 = vadd.f32 %v1702, 0.5
      %v1715 = vadd.f32 %v1703, 0.5
      %v1716 = vadd.f32 %v1704, 0.5
      %v1717 = vadd.f32 %v1705, 0.5
      %v1718 = vadd.f32 %v1706, 0.5
      %v1719 = vadd.f32 %v1707, 0.5
      %v1720 = vadd.f32 %v1708, 0.5
      %v1721 = vmul.f32 %v1611, %v1709
      %v1722 = vmul.f32 %v1629, %v1710
      %v1723 = vmul.f32 %v1647, %v1711
      %v1724 = vmul.f32 %v1665, %v1712
      %v1725 = vmul.f32 %v1613, %v1713
      %v1726 = vmul.f32 %v1631, %v1714
      %v1727 = vmul.f32 %v1649, %v1715
      %v1728 = vmul.f32 %v1667, %v1716
      %v1729 = vmul.f32 %v1616, %v1717
      %v1730 = vmul.f32 %v1634, %v1718
      %v1731 = vmul.f32 %v1652, %v1719
      %v1732 = vmul.f32 %v1670, %v1720
      %s1733 = scalar_lea.vmem %s1, 128
      %v1734 = vld [vmem:[%s1733] sm:$0xf]
      %v1735 = vld [vmem:[%s1733 + $0x4] sm:$0xf]
      %v1736 = vld [vmem:[%s1733 + $0x8] sm:$0xf]
      %v1737 = vpack.c.bf16 %v1725, %v1721
      %v1738 = vpack.c.bf16 %v1726, %v1722
      %v1739 = vpack.c.bf16 %v1727, %v1723
      %v1740 = vpack.c.bf16 %v1728, %v1724
      %v1741 = vpack.c.bf16 %v1729, %v1729
      %v1742 = vpack.c.bf16 %v1730, %v1730
      %v1743 = vpack.c.bf16 %v1731, %v1731
      %v1744 = vpack.c.bf16 %v1732, %v1732
      %s1745 = scalar_lea.vmem %s2, 256
      %v1746 = vld [vmem:[%s1745] sm:$0xff]
      %v1747 = vld [vmem:[%s1745 + $0x8] sm:$0xff]
      %v1748 = vld [vmem:[%s1745 + $0x10] sm:$0xff]
      %1750 = vset.pattern.permute.xlu0 0
      %1751 = vperm.xlu0 %1750, %v1746
      %v1752 = vpop.permute.xlu0 %1751
      %1755 = vset.pattern.permute.xlu0 0
      %1756 = vperm.xlu0 %1755, %v1747
      %v1757 = vpop.permute.xlu0 %1756
      %1760 = vset.pattern.permute.xlu0 0
      %1761 = vperm.xlu0 %1760, %v1748
      %v1762 = vpop.permute.xlu0 %1761
      %v1767 = vunpack.c.l.b16 %v1734
      %v1768 = vunpack.c.l.b16 %v1735
      %v1769 = vunpack.c.l.b16 %v1736
      %v1770 = vpack.c.b16 %v1768, %v1767
      %v1771 = vpack.c.b16 %v1769, %v1769
      %v1773 = vsel %vm447, %v1770, 0
      %v1776 = vsel %vm447, %v1771, 0
      %v1779 = vsel %vm454, %v1741, 0
      %v1782 = vsel %vm454, %v1742, 0
      %v1785 = vsel %vm454, %v1743, 0
      %v1788 = vsel %vm454, %v1744, 0
      %1790 = vmatpush.bf16.msra.mxu0 0
      %1791 = vmatpush.bf16.msra.mxu0 0
      %1792 = vmatpush.bf16.msra.mxu0 0
      %1793 = vmatpush.bf16.msra.mxu0 0
      %1794 = vmatpush.bf16.msra.mxu0 0
      %1795 = vmatpush.bf16.msra.mxu0 0
      %1796 = vmatpush.bf16.msra.mxu0 %v1779
      %1797 = vmatpush.bf16.msra.mxu0 %v1737
      %1798 = vmatmul.bf16.gmra.mxu0 %v1773
      %v1799 = vpop.f32.mrf.mxu0
      %v1800 = vadd.f32 %v1752, %v1799
      %v1801 = vpop.f32.mrf.mxu0
      %v1802 = vadd.f32 %v1757, %v1801
      %1803 = vmatmul.bf16.gmra.mxu0 %v1776
      %v1804 = vpop.f32.mrf.mxu0
      %v1805 = vadd.f32 %v1762, %v1804
      %v1806 = vpop.f32.mrf.mxu0
      %1807 = vdwg.mxu0
      %1808 = vmatpush.bf16.msra.mxu0 0
      %1809 = vmatpush.bf16.msra.mxu0 0
      %1810 = vmatpush.bf16.msra.mxu0 0
      %1811 = vmatpush.bf16.msra.mxu0 0
      %1812 = vmatpush.bf16.msra.mxu0 0
      %1813 = vmatpush.bf16.msra.mxu0 0
      %1814 = vmatpush.bf16.msra.mxu0 %v1782
      %1815 = vmatpush.bf16.msra.mxu0 %v1738
      %1816 = vmatmul.bf16.gmra.mxu0 %v1773
      %v1817 = vpop.f32.mrf.mxu0
      %v1818 = vadd.f32 %v1752, %v1817
      %v1819 = vpop.f32.mrf.mxu0
      %v1820 = vadd.f32 %v1757, %v1819
      %1821 = vmatmul.bf16.gmra.mxu0 %v1776
      %v1822 = vpop.f32.mrf.mxu0
      %v1823 = vadd.f32 %v1762, %v1822
      %v1824 = vpop.f32.mrf.mxu0
      %1825 = vdwg.mxu0
      %1826 = vmatpush.bf16.msra.mxu0 0
      %1827 = vmatpush.bf16.msra.mxu0 0
      %1828 = vmatpush.bf16.msra.mxu0 0
      %1829 = vmatpush.bf16.msra.mxu0 0
      %1830 = vmatpush.bf16.msra.mxu0 0
      %1831 = vmatpush.bf16.msra.mxu0 0
      %1832 = vmatpush.bf16.msra.mxu0 %v1785
      %1833 = vmatpush.bf16.msra.mxu0 %v1739
      %1834 = vmatmul.bf16.gmra.mxu0 %v1773
      %v1835 = vpop.f32.mrf.mxu0
      %v1836 = vadd.f32 %v1752, %v1835
      %v1837 = vpop.f32.mrf.mxu0
      %v1838 = vadd.f32 %v1757, %v1837
      %1839 = vmatmul.bf16.gmra.mxu0 %v1776
      %v1840 = vpop.f32.mrf.mxu0
      %v1841 = vadd.f32 %v1762, %v1840
      %v1842 = vpop.f32.mrf.mxu0
      %1843 = vdwg.mxu0
      %1844 = vmatpush.bf16.msra.mxu0 0
      %1845 = vmatpush.bf16.msra.mxu0 0
      %1846 = vmatpush.bf16.msra.mxu0 0
      %1847 = vmatpush.bf16.msra.mxu0 0
      %1848 = vmatpush.bf16.msra.mxu0 0
      %1849 = vmatpush.bf16.msra.mxu0 0
      %1850 = vmatpush.bf16.msra.mxu0 %v1788
      %1851 = vmatpush.bf16.msra.mxu0 %v1740
      %1852 = vmatmul.bf16.gmra.mxu0 %v1773
      %v1853 = vpop.f32.mrf.mxu0
      %v1854 = vadd.f32 %v1752, %v1853
      %v1855 = vpop.f32.mrf.mxu0
      %v1856 = vadd.f32 %v1757, %v1855
      %1857 = vmatmul.bf16.gmra.mxu0 %v1776
      %v1858 = vpop.f32.mrf.mxu0
      %v1859 = vadd.f32 %v1762, %v1858
      %v1860 = vpop.f32.mrf.mxu0
      %1861 = vdwg.mxu0
      %v1862 = vmul.f32 %v1800, 0.5
      %v1863 = vmul.f32 %v1818, 0.5
      %v1864 = vmul.f32 %v1836, 0.5
      %v1865 = vmul.f32 %v1854, 0.5
      %v1866 = vmul.f32 %v1802, 0.5
      %v1867 = vmul.f32 %v1820, 0.5
      %v1868 = vmul.f32 %v1838, 0.5
      %v1869 = vmul.f32 %v1856, 0.5
      %v1870 = vmul.f32 %v1805, 0.5
      %v1871 = vmul.f32 %v1823, 0.5
      %v1872 = vmul.f32 %v1841, 0.5
      %v1873 = vmul.f32 %v1859, 0.5
      %v1874 = vtanh.pop %v1862
      %v1875 = vtanh.pop %v1863
      %v1876 = vtanh.pop %v1864
      %v1877 = vtanh.pop %v1865
      %v1878 = vtanh.pop %v1866
      %v1879 = vtanh.pop %v1867
      %v1880 = vtanh.pop %v1868
      %v1881 = vtanh.pop %v1869
      %v1882 = vtanh.pop %v1870
      %v1883 = vtanh.pop %v1871
      %v1884 = vtanh.pop %v1872
      %v1885 = vtanh.pop %v1873
      %v1886 = vmul.f32 %v1874, 0.5
      %v1887 = vmul.f32 %v1875, 0.5
      %v1888 = vmul.f32 %v1876, 0.5
      %v1889 = vmul.f32 %v1877, 0.5
      %v1890 = vmul.f32 %v1878, 0.5
      %v1891 = vmul.f32 %v1879, 0.5
      %v1892 = vmul.f32 %v1880, 0.5
      %v1893 = vmul.f32 %v1881, 0.5
      %v1894 = vmul.f32 %v1882, 0.5
      %v1895 = vmul.f32 %v1883, 0.5
      %v1896 = vmul.f32 %v1884, 0.5
      %v1897 = vmul.f32 %v1885, 0.5
      %v1898 = vadd.f32 %v1886, 0.5
      %v1899 = vadd.f32 %v1887, 0.5
      %v1900 = vadd.f32 %v1888, 0.5
      %v1901 = vadd.f32 %v1889, 0.5
      %v1902 = vadd.f32 %v1890, 0.5
      %v1903 = vadd.f32 %v1891, 0.5
      %v1904 = vadd.f32 %v1892, 0.5
      %v1905 = vadd.f32 %v1893, 0.5
      %v1906 = vadd.f32 %v1894, 0.5
      %v1907 = vadd.f32 %v1895, 0.5
      %v1908 = vadd.f32 %v1896, 0.5
      %v1909 = vadd.f32 %v1897, 0.5
      %v1910 = vmul.f32 %v1800, %v1898
      %v1911 = vmul.f32 %v1818, %v1899
      %v1912 = vmul.f32 %v1836, %v1900
      %v1913 = vmul.f32 %v1854, %v1901
      %v1914 = vmul.f32 %v1802, %v1902
      %v1915 = vmul.f32 %v1820, %v1903
      %v1916 = vmul.f32 %v1838, %v1904
      %v1917 = vmul.f32 %v1856, %v1905
      %v1918 = vmul.f32 %v1805, %v1906
      %v1919 = vmul.f32 %v1823, %v1907
      %v1920 = vmul.f32 %v1841, %v1908
      %v1921 = vmul.f32 %v1859, %v1909
      %s1922 = scalar_lea.vmem %s1, 144
      %v1923 = vld [vmem:[%s1922] sm:$0xf]
      %v1924 = vpack.c.bf16 %v1914, %v1910
      %v1925 = vpack.c.bf16 %v1915, %v1911
      %v1926 = vpack.c.bf16 %v1916, %v1912
      %v1927 = vpack.c.bf16 %v1917, %v1913
      %v1928 = vpack.c.bf16 %v1918, %v1918
      %v1929 = vpack.c.bf16 %v1919, %v1919
      %v1930 = vpack.c.bf16 %v1920, %v1920
      %v1931 = vpack.c.bf16 %v1921, %v1921
      %v1933 = vsel %vm447, %v1923, 0
      %v1936 = vsel %vm454, %v1928, 0
      %v1939 = vsel %vm454, %v1929, 0
      %v1942 = vsel %vm454, %v1930, 0
      %v1945 = vsel %vm454, %v1931, 0
      %1947 = vmatpush.bf16.msra.mxu0 0
      %1948 = vmatpush.bf16.msra.mxu0 0
      %1949 = vmatpush.bf16.msra.mxu0 0
      %1950 = vmatpush.bf16.msra.mxu0 0
      %1951 = vmatpush.bf16.msra.mxu0 0
      %1952 = vmatpush.bf16.msra.mxu0 0
      %1953 = vmatpush.bf16.msra.mxu0 %v1936
      %1954 = vmatpush.bf16.msra.mxu0 %v1924
      %1955 = vmatmul.bf16.gmra.mxu0 %v1933
      %v1956 = vpop.f32.mrf.mxu0
      %v1957 = vadd.f32 0.0, %v1956
      %v1958 = vpop.f32.mrf.mxu0
      %1959 = vdwg.mxu0
      %1960 = vmatpush.bf16.msra.mxu0 0
      %1961 = vmatpush.bf16.msra.mxu0 0
      %1962 = vmatpush.bf16.msra.mxu0 0
      %1963 = vmatpush.bf16.msra.mxu0 0
      %1964 = vmatpush.bf16.msra.mxu0 0
      %1965 = vmatpush.bf16.msra.mxu0 0
      %1966 = vmatpush.bf16.msra.mxu0 %v1939
      %1967 = vmatpush.bf16.msra.mxu0 %v1925
      %1968 = vmatmul.bf16.gmra.mxu0 %v1933
      %v1969 = vpop.f32.mrf.mxu0
      %v1970 = vadd.f32 0.0, %v1969
      %v1971 = vpop.f32.mrf.mxu0
      %1972 = vdwg.mxu0
      %1973 = vmatpush.bf16.msra.mxu0 0
      %1974 = vmatpush.bf16.msra.mxu0 0
      %1975 = vmatpush.bf16.msra.mxu0 0
      %1976 = vmatpush.bf16.msra.mxu0 0
      %1977 = vmatpush.bf16.msra.mxu0 0
      %1978 = vmatpush.bf16.msra.mxu0 0
      %1979 = vmatpush.bf16.msra.mxu0 %v1942
      %1980 = vmatpush.bf16.msra.mxu0 %v1926
      %1981 = vmatmul.bf16.gmra.mxu0 %v1933
      %v1982 = vpop.f32.mrf.mxu0
      %v1983 = vadd.f32 0.0, %v1982
      %v1984 = vpop.f32.mrf.mxu0
      %1985 = vdwg.mxu0
      %1986 = vmatpush.bf16.msra.mxu0 0
      %1987 = vmatpush.bf16.msra.mxu0 0
      %1988 = vmatpush.bf16.msra.mxu0 0
      %1989 = vmatpush.bf16.msra.mxu0 0
      %1990 = vmatpush.bf16.msra.mxu0 0
      %1991 = vmatpush.bf16.msra.mxu0 0
      %1992 = vmatpush.bf16.msra.mxu0 %v1945
      %1993 = vmatpush.bf16.msra.mxu0 %v1927
      %1994 = vmatmul.bf16.gmra.mxu0 %v1933
      %v1995 = vpop.f32.mrf.mxu0
      %v1996 = vadd.f32 0.0, %v1995
      %v1997 = vpop.f32.mrf.mxu0
      %1998 = vdwg.mxu0
      %s1999 = scalar_lea.vmem %s2, 288
      %v2000 = vld [vmem:[%s1999] sm:$0xff]
      %2002 = vset.pattern.permute.xlu0 0
      %2003 = vperm.xlu0 %2002, %v2000
      %v2004 = vpop.permute.xlu0 %2003
      %v2006 = vadd.f32 %v1957, %v2004
      %v2007 = vadd.f32 %v1970, %v2004
      %v2008 = vadd.f32 %v1983, %v2004
      %v2009 = vadd.f32 %v1996, %v2004
      %v2014 = vrot.slane %v2007, 7
      %v2015 = vrot.slane %v2008, 6
      %v2016 = vrot.slane %v2009, 5
      %vm2017 = vcmask 1040384
      %v2018 = vsel %vm2017, %v2006, %v2014
      %vm2019 = vcmask 1042434
      %v2020 = vsel %vm2019, %v2015, %v2016
      %vm2021 = vcmask 1041408
      %v2022 = vsel %vm2021, %v2018, %v2020
      %v2024 = vlaneseq
      %vm2025 = vcmp.ge.s32.totalorder %v2024, 0
      %vm2026 = vcmp.lt.s32.totalorder %v2024, 512
      %vm2027 = vmand %vm2025, %vm2026
      %2028 = vst.msk [vmem:[%s170] sm:$0xf] %vm2027, %v2022
      %s2029 = smul.u32 4, %s14
      %p2030 = scmp.lt.s32.totalorder %s2029, 7
      %s2031 = scalar_select %p2030, %s2029, 7
      %s2032 = scalar_lea.vmem %s3, %s2031
      // Predicated region
      $region33: #{pinn_u_forward.1} parent=31 // pred_check
        %p2033 = pneg %p100
      $region34: #{pinn_u_forward.1} parent=31 // pred_check_branch
        %2035 = sbr.rel (%p2033) target = $region36
      $region35: #{pinn_u_forward.1} parent=31 // pred_region
        %s2036 = smul.u32 4, %s14
      $region36: #{pinn_u_forward.1} parent=31 // pred_fallthru
        _
    $region32: #{pinn_u_forward.1} parent=5 // pred_fallthru
      _
    %p2037 = scmp.le.s32.totalorder 2, %s9
    // Predicated region
    $region37: #{pinn_u_forward.1} parent=5 // pred_check
      %p2038 = pneg %p2037
    $region38: #{pinn_u_forward.1} parent=5 // pred_check_branch
      %2040 = sbr.rel (%p2038) target = $region40
    $region39: #{pinn_u_forward.1} parent=5 // pred_region
      %s2041 = ssub.s32 %s9, 2
      // Predicated region
      $region41: #{pinn_u_forward.1} parent=39 // pred_check
        %p2042 = pneg %p106
      $region42: #{pinn_u_forward.1} parent=39 // pred_check_branch
        %2044 = sbr.rel (%p2042) target = $region44
      $region43: #{pinn_u_forward.1} parent=39 // pred_region
        %s2045 = smul.u32 4, %s15
        %p2046 = scmp.lt.s32.totalorder %s2045, 7
        %s2047 = scalar_select %p2046, %s2045, 7
        %s2048 = scalar_lea.vmem %s3, %s2047
      $region44: #{pinn_u_forward.1} parent=39 // pred_fallthru
        _
    $region40: #{pinn_u_forward.1} parent=5 // pred_fallthru
      _
  $region6: #{pinn_u_forward.1} parent=0 // loop_footer
    %s13 = sadd.s32 1, %s9
  $region7: #{pinn_u_forward.1} parent=0 // loop_footer_branch
    %8 = sbr.rel target = $region3
  $region8: #{pinn_u_forward.1} parent=0 // loop_exit
    _

</llo_original>
